<compile_context>
chip_gen: v5e
topology: v5e:2x2
jax: 0.10.0
libtpu: 0.0.40
codegen_flags: <defaults>
</compile_context>

<pallas_src>
import functools

import jax
import jax.numpy as jnp
from jax import lax
from jax.experimental import pallas as pl
from jax.experimental.pallas import tpu as pltpu


# ---------------------------------------------------------------------------
# Small helpers
# ---------------------------------------------------------------------------
def _round_up(x, m):
    return ((x + m - 1) // m) * m


def _batch_tiling(n):
    """Return (n_padded, tile). Rows padded to a multiple of 8; once n >= 16
    the tile guarantees >= 2 blocks on the 'parallel' axis (v7x megacore)."""
    if n < 16:
        npad = _round_up(max(n, 1), 8)
        return npad, npad
    tb = min(256, _round_up(pl.cdiv(n, 2), 8))
    return _round_up(n, tb), tb


def _vmem_limit(*block_bytes):
    """Derived scoped-VMEM limit, capped at 48 MiB (headroom on v7x's 64 MiB)."""
    need = sum(block_bytes)
    return int(min(48 << 20, max(16 << 20, 4 * need)))


# ---------------------------------------------------------------------------
# In-kernel gather + running max over the sequence axis
# ---------------------------------------------------------------------------
def _row_maxpool(table_ref, ids_ref, row, n_tokens):
    """table_ref: (VP, HP) f32 VMEM — folded emb@W.T+b table (resident).
    ids_ref: (R, L) int32 SMEM (scalar prefetch). Returns (1, HP) f32 =
    max_t table[ids[row, t]]  ==  max-pool_t( Linear(Embedding(ids[row, t])) )."""
    acc = table_ref[pl.ds(ids_ref[row, 0], 1), :]
    for t in range(1, n_tokens):                 # L is small & static: unrolled
        acc = jnp.maximum(acc, table_ref[pl.ds(ids_ref[row, t], 1), :])
    return acc


# ---------------------------------------------------------------------------
# Kernels
# ---------------------------------------------------------------------------
def encoder_kernel(ids_ref, table_ref, o_ref):
    """o_ref: (TB, HP) f32 sentence vectors for this batch block."""
    n_tokens = ids_ref.shape[1]
    tb = o_ref.shape[0]
    row0 = pl.program_id(0) * tb

    def body(r, carry):
        o_ref[pl.ds(r, 1), :] = _row_maxpool(table_ref, ids_ref, row0 + r, n_tokens)
        return carry

    lax.fori_loop(0, tb, body, 0, unroll=(tb <= 32))


def triplet_kernel(ids_ref, table_ref, hinge_ref, a_scr, p_scr, n_scr,
                   *, rows_per_role, margin):
    """Fused encoder(anchor/pos/neg) + normalize + cosine triplet hinge.
    ids_ref rows are packed role-major: [0,R) anchor, [R,2R) positive,
    [2R,3R) negative with R = rows_per_role.  hinge_ref: (TE, 1) f32."""
    n_tokens = ids_ref.shape[1]
    te = hinge_ref.shape[0]
    e0 = pl.program_id(0) * te

    def body(e, carry):
        a_scr[pl.ds(e, 1), :] = _row_maxpool(table_ref, ids_ref, e0 + e, n_tokens)
        p_scr[pl.ds(e, 1), :] = _row_maxpool(
            table_ref, ids_ref, rows_per_role + e0 + e, n_tokens)
        n_scr[pl.ds(e, 1), :] = _row_maxpool(
            table_ref, ids_ref, 2 * rows_per_role + e0 + e, n_tokens)
        return carry

    lax.fori_loop(0, te, body, 0, unroll=(te <= 32))

    def unit(t):
        # torch.nn.functional.normalize(dim=-1, eps=1e-12) via rsqrt (EUP).
        ssq = jnp.sum(t * t, axis=-1, keepdims=True)
        return t * lax.rsqrt(jnp.maximum(ssq, 1e-24))

    a = unit(a_scr[...])
    p = unit(p_scr[...])
    n = unit(n_scr[...])
    d_pos = 1.0 - jnp.sum(a * p, axis=-1, keepdims=True)    # (TE, 1)
    d_neg = 1.0 - jnp.sum(a * n, axis=-1, keepdims=True)    # (TE, 1)
    hinge_ref[...] = jnp.maximum(d_pos - d_neg + margin, 0.0)


# ---------------------------------------------------------------------------
# Pallas wrappers
# ---------------------------------------------------------------------------
def _encode_ids(params, ids):
    """ids: (N, L) int32. Returns (N, HP) f32 sentence vectors (cols >= H zero)."""
    n, seq = ids.shape
    n_pad, tb = _batch_tiling(n)
    HP, VP = params["HP"], params["VP"]
    ids_pad = jnp.zeros((n_pad, seq), jnp.int32).at[:n].set(ids.astype(jnp.int32))

    out = pl.pallas_call(
        encoder_kernel,
        out_shape=jax.ShapeDtypeStruct((n_pad, HP), jnp.float32),
        grid_spec=pltpu.PrefetchScalarGridSpec(
            num_scalar_prefetch=1,                 # ids -> SMEM
            grid=(n_pad // tb,),
            in_specs=[pl.BlockSpec((VP, HP), lambda bi, ids_s: (0, 0))],
            out_specs=pl.BlockSpec((tb, HP), lambda bi, ids_s: (bi, 0)),
        ),
        compiler_params=pltpu.CompilerParams(
            dimension_semantics=("parallel",),
            vmem_limit_bytes=_vmem_limit(2 * VP * HP * 4, 2 * tb * HP * 4),
        ),
    )(ids_pad, params["table"])
    return out[:n, :]


def _triplet_loss(params, s1, s2, s3, margin=0.1):
    """s1/s2/s3: (B, L) int32 anchor/positive/negative. Returns scalar loss."""
    B, seq = s1.shape
    b_pad, te = _batch_tiling(B)
    HP, VP = params["HP"], params["VP"]

    ids = jnp.zeros((3 * b_pad, seq), jnp.int32)
    ids = (ids.at[:B].set(s1.astype(jnp.int32))
              .at[b_pad:b_pad + B].set(s2.astype(jnp.int32))
              .at[2 * b_pad:2 * b_pad + B].set(s3.astype(jnp.int32)))

    hinge = pl.pallas_call(
        functools.partial(triplet_kernel, rows_per_role=b_pad, margin=margin),
        out_shape=jax.ShapeDtypeStruct((b_pad, 1), jnp.float32),
        grid_spec=pltpu.PrefetchScalarGridSpec(
            num_scalar_prefetch=1,                 # ids -> SMEM
            grid=(b_pad // te,),
            in_specs=[pl.BlockSpec((VP, HP), lambda bi, ids_s: (0, 0))],
            out_specs=pl.BlockSpec((te, 1), lambda bi, ids_s: (bi, 0)),
            scratch_shapes=[pltpu.VMEM((te, HP), jnp.float32)] * 3,
        ),
        compiler_params=pltpu.CompilerParams(
            dimension_semantics=("parallel",),
            vmem_limit_bytes=_vmem_limit(2 * VP * HP * 4, 3 * te * HP * 4,
                                         2 * te * 4),
        ),
    )(ids, params["table"])
    # Final mean over the B valid examples: tiny O(B) reduction, cheaper in
    # XLA than another kernel launch (per review). Padded rows are sliced off.
    return jnp.mean(hinge[:B, 0])


# ---------------------------------------------------------------------------
# Model (parameters + forward)
# ---------------------------------------------------------------------------
def init_params(config, key):
    H = config["hidden_size"]
    HP = _round_up(max(H, 1), 128)                # lane-dense padded hidden
    vocab = config["vocab_size"] + 1
    VP = _round_up(vocab, 8)
    k_emb, k_w, k_b = jax.random.split(key, 3)

    emb = jax.random.normal(k_emb, (vocab, H), jnp.float32) * 0.02
    emb = emb.at[0].set(0.0)                      # padding_idx=0 -> zero row
    w = jax.random.normal(k_w, (H, H), jnp.float32) * 0.05   # nn.Linear (out,in)
    b = jax.random.normal(k_b, (H,), jnp.float32) * 0.05

    # Fold the Linear into the embedding table ONCE (exact in f32):
    #   max_t(Linear(emb[id_t])) == max_t(table[id_t]),  table = emb @ W.T + b
    proj = jnp.dot(emb, w.T, precision=jax.lax.Precision.HIGHEST) + b
    table = jnp.zeros((VP, HP), jnp.float32).at[:vocab, :H].set(proj)

    return {"emb": emb, "w": w, "b": b, "H": H, "HP": HP, "VP": VP,
            "table": table}


def sentence_encoder(params, ids):
    """ids: (B, L) int32 -> (B, H). Dropout in the PyTorch module is never
    applied in forward."""
    return _encode_ids(params, ids)[:, :params["H"]]


def siamese_forward(params, sentence1, sentence2=None, sentence3=None,
                    target=None, margin=0.1):
    if sentence2 is not None and sentence3 is not None:
        return _triplet_loss(params, sentence1, sentence2, sentence3, margin)
    return sentence_encoder(params, sentence1)


# ---------------------------------------------------------------------------
# Pure-JAX f32 reference (correctness check only)
# ---------------------------------------------------------------------------
def _encode_ref(params, ids):
    emb = params["emb"][ids]                      # (B, L, H)
    y = jnp.dot(emb, params["w"].T,
                precision=jax.lax.Precision.HIGHEST) + params["b"]
    return jnp.max(y, axis=1)                     # (B, H)


def _loss_ref(params, s1, s2, s3, margin=0.1):
    def norm(t):
        return t / jnp.maximum(jnp.linalg.norm(t, axis=-1, keepdims=True), 1e-12)
    a = norm(_encode_ref(params, s1))
    p = norm(_encode_ref(params, s2))
    n = norm(_encode_ref(params, s3))
    dp = 1.0 - jnp.sum(a * p, axis=-1)
    dn = 1.0 - jnp.sum(a * n, axis=-1)
    return jnp.mean(jnp.maximum(dp - dn + margin, 0.0))


# ---------------------------------------------------------------------------
if __name__ == "__main__":
    config = {"hidden_size": 32, "vocab_size": 30, "max_length": 8}
    B, L = 2, config["max_length"]

    key = jax.random.PRNGKey(0)
    k_param, k1, k2, k3 = jax.random.split(key, 4)
    params = init_params(config, k_param)

    vocab_plus_pad = config["vocab_size"] + 1
    s1 = jax.random.randint(k1, (B, L), 0, vocab_plus_pad, dtype=jnp.int32)
    s2 = jax.random.randint(k2, (B, L), 0, vocab_plus_pad, dtype=jnp.int32)
    s3 = jax.random.randint(k3, (B, L), 0, vocab_plus_pad, dtype=jnp.int32)

    # Triplet branch: ONE fused kernel (encode x3 + normalize + hinge).
    loss = siamese_forward(params, s1, s2, s3)
    loss = jax.block_until_ready(loss)

    # Single-sentence branch: (B, H) encoding.
    vec = siamese_forward(params, s1)
    vec = jax.block_until_ready(vec)

    assert vec.shape == (B, config["hidden_size"])
    assert loss.shape == ()

    # Correctness vs pure-JAX f32 reference (kernel is f32 end-to-end now).
    vec_ref = _encode_ref(params, s1)
    loss_ref_val = _loss_ref(params, s1, s2, s3)
    assert jnp.allclose(vec, vec_ref, atol=1e-3, rtol=1e-3), "encoder mismatch"
    assert jnp.allclose(loss, loss_ref_val, atol=1e-3, rtol=1e-3), "loss mismatch"

    print("KERNEL_OK")
</pallas_src>

<mosaic_0001>
module attributes {stable_mosaic.version = 11 : i64} {
  func.func @triplet_kernel(%arg0: i32, %arg1: memref<24x8xi32, #tpu.memory_space<smem>>, %arg2: memref<32x128xf32, #tpu.memory_space<vmem>>, %arg3: memref<8x1xf32, #tpu.memory_space<vmem>>, %arg4: memref<8x128xf32, #tpu.memory_space<vmem>>, %arg5: memref<8x128xf32, #tpu.memory_space<vmem>>, %arg6: memref<8x128xf32, #tpu.memory_space<vmem>>) attributes {dimension_semantics = [#tpu.dimension_semantics<parallel>], iteration_bounds = array<i64: 1>, scalar_prefetch = 1 : i64, scratch_operands = 3 : i64, tpu.core_type = #tpu.core_type<tc>, window_params = [{pipeline_mode = #tpu.pipeline_mode<synchronous>, transform_indices = @transform_0, window_bounds = array<i64: 32, 128>}, {transform_indices = @transform_1, window_bounds = array<i64: 8, 1>}]} {
    %c8_i32 = arith.constant 8 : i32
    %0 = arith.muli %arg0, %c8_i32 : i32
    %c0_i32 = arith.constant 0 : i32
    %1 = arith.addi %0, %c0_i32 : i32
    %2 = arith.index_cast %1 : i32 to index
    %c0 = arith.constant 0 : index
    %3 = memref.load %arg1[%2, %c0] : memref<24x8xi32, #tpu.memory_space<smem>>
    %4 = arith.index_cast %3 : i32 to index
    %c0_0 = arith.constant 0 : index
    %5 = vector.load %arg2[%4, %c0_0] : memref<32x128xf32, #tpu.memory_space<vmem>>, vector<1x128xf32>
    %6 = arith.index_cast %1 : i32 to index
    %c1 = arith.constant 1 : index
    %7 = memref.load %arg1[%6, %c1] : memref<24x8xi32, #tpu.memory_space<smem>>
    %8 = arith.index_cast %7 : i32 to index
    %c0_1 = arith.constant 0 : index
    %9 = vector.load %arg2[%8, %c0_1] : memref<32x128xf32, #tpu.memory_space<vmem>>, vector<1x128xf32>
    %10 = arith.maximumf %5, %9 : vector<1x128xf32>
    %11 = arith.index_cast %1 : i32 to index
    %c2 = arith.constant 2 : index
    %12 = memref.load %arg1[%11, %c2] : memref<24x8xi32, #tpu.memory_space<smem>>
    %13 = arith.index_cast %12 : i32 to index
    %c0_2 = arith.constant 0 : index
    %14 = vector.load %arg2[%13, %c0_2] : memref<32x128xf32, #tpu.memory_space<vmem>>, vector<1x128xf32>
    %15 = arith.maximumf %10, %14 : vector<1x128xf32>
    %16 = arith.index_cast %1 : i32 to index
    %c3 = arith.constant 3 : index
    %17 = memref.load %arg1[%16, %c3] : memref<24x8xi32, #tpu.memory_space<smem>>
    %18 = arith.index_cast %17 : i32 to index
    %c0_3 = arith.constant 0 : index
    %19 = vector.load %arg2[%18, %c0_3] : memref<32x128xf32, #tpu.memory_space<vmem>>, vector<1x128xf32>
    %20 = arith.maximumf %15, %19 : vector<1x128xf32>
    %21 = arith.index_cast %1 : i32 to index
    %c4 = arith.constant 4 : index
    %22 = memref.load %arg1[%21, %c4] : memref<24x8xi32, #tpu.memory_space<smem>>
    %23 = arith.index_cast %22 : i32 to index
    %c0_4 = arith.constant 0 : index
    %24 = vector.load %arg2[%23, %c0_4] : memref<32x128xf32, #tpu.memory_space<vmem>>, vector<1x128xf32>
    %25 = arith.maximumf %20, %24 : vector<1x128xf32>
    %26 = arith.index_cast %1 : i32 to index
    %c5 = arith.constant 5 : index
    %27 = memref.load %arg1[%26, %c5] : memref<24x8xi32, #tpu.memory_space<smem>>
    %28 = arith.index_cast %27 : i32 to index
    %c0_5 = arith.constant 0 : index
    %29 = vector.load %arg2[%28, %c0_5] : memref<32x128xf32, #tpu.memory_space<vmem>>, vector<1x128xf32>
    %30 = arith.maximumf %25, %29 : vector<1x128xf32>
    %31 = arith.index_cast %1 : i32 to index
    %c6 = arith.constant 6 : index
    %32 = memref.load %arg1[%31, %c6] : memref<24x8xi32, #tpu.memory_space<smem>>
    %33 = arith.index_cast %32 : i32 to index
    %c0_6 = arith.constant 0 : index
    %34 = vector.load %arg2[%33, %c0_6] : memref<32x128xf32, #tpu.memory_space<vmem>>, vector<1x128xf32>
    %35 = arith.maximumf %30, %34 : vector<1x128xf32>
    %36 = arith.index_cast %1 : i32 to index
    %c7 = arith.constant 7 : index
    %37 = memref.load %arg1[%36, %c7] : memref<24x8xi32, #tpu.memory_space<smem>>
    %38 = arith.index_cast %37 : i32 to index
    %c0_7 = arith.constant 0 : index
    %39 = vector.load %arg2[%38, %c0_7] : memref<32x128xf32, #tpu.memory_space<vmem>>, vector<1x128xf32>
    %40 = arith.maximumf %35, %39 : vector<1x128xf32>
    %41 = arith.index_cast %c0_i32 : i32 to index
    %c0_8 = arith.constant 0 : index
    %42 = vector.load %arg4[%41, %c0_8] : memref<8x128xf32, #tpu.memory_space<vmem>>, vector<1x128xf32>
    tpu.vector_store %arg4[%41, %c0_8], %40 {strides = array<i32>} : memref<8x128xf32, #tpu.memory_space<vmem>>, vector<1x128xf32>,
    %c8_i32_9 = arith.constant 8 : i32
    %43 = arith.addi %c8_i32_9, %0 : i32
    %44 = arith.addi %43, %c0_i32 : i32
    %45 = arith.index_cast %44 : i32 to index
    %c0_10 = arith.constant 0 : index
    %46 = memref.load %arg1[%45, %c0_10] : memref<24x8xi32, #tpu.memory_space<smem>>
    %47 = arith.index_cast %46 : i32 to index
    %c0_11 = arith.constant 0 : index
    %48 = vector.load %arg2[%47, %c0_11] : memref<32x128xf32, #tpu.memory_space<vmem>>, vector<1x128xf32>
    %49 = arith.index_cast %44 : i32 to index
    %c1_12 = arith.constant 1 : index
    %50 = memref.load %arg1[%49, %c1_12] : memref<24x8xi32, #tpu.memory_space<smem>>
    %51 = arith.index_cast %50 : i32 to index
    %c0_13 = arith.constant 0 : index
    %52 = vector.load %arg2[%51, %c0_13] : memref<32x128xf32, #tpu.memory_space<vmem>>, vector<1x128xf32>
    %53 = arith.maximumf %48, %52 : vector<1x128xf32>
    %54 = arith.index_cast %44 : i32 to index
    %c2_14 = arith.constant 2 : index
    %55 = memref.load %arg1[%54, %c2_14] : memref<24x8xi32, #tpu.memory_space<smem>>
    %56 = arith.index_cast %55 : i32 to index
    %c0_15 = arith.constant 0 : index
    %57 = vector.load %arg2[%56, %c0_15] : memref<32x128xf32, #tpu.memory_space<vmem>>, vector<1x128xf32>
    %58 = arith.maximumf %53, %57 : vector<1x128xf32>
    %59 = arith.index_cast %44 : i32 to index
    %c3_16 = arith.constant 3 : index
    %60 = memref.load %arg1[%59, %c3_16] : memref<24x8xi32, #tpu.memory_space<smem>>
    %61 = arith.index_cast %60 : i32 to index
    %c0_17 = arith.constant 0 : index
    %62 = vector.load %arg2[%61, %c0_17] : memref<32x128xf32, #tpu.memory_space<vmem>>, vector<1x128xf32>
    %63 = arith.maximumf %58, %62 : vector<1x128xf32>
    %64 = arith.index_cast %44 : i32 to index
    %c4_18 = arith.constant 4 : index
    %65 = memref.load %arg1[%64, %c4_18] : memref<24x8xi32, #tpu.memory_space<smem>>
    %66 = arith.index_cast %65 : i32 to index
    %c0_19 = arith.constant 0 : index
    %67 = vector.load %arg2[%66, %c0_19] : memref<32x128xf32, #tpu.memory_space<vmem>>, vector<1x128xf32>
    %68 = arith.maximumf %63, %67 : vector<1x128xf32>
    %69 = arith.index_cast %44 : i32 to index
    %c5_20 = arith.constant 5 : index
    %70 = memref.load %arg1[%69, %c5_20] : memref<24x8xi32, #tpu.memory_space<smem>>
    %71 = arith.index_cast %70 : i32 to index
    %c0_21 = arith.constant 0 : index
    %72 = vector.load %arg2[%71, %c0_21] : memref<32x128xf32, #tpu.memory_space<vmem>>, vector<1x128xf32>
    %73 = arith.maximumf %68, %72 : vector<1x128xf32>
    %74 = arith.index_cast %44 : i32 to index
    %c6_22 = arith.constant 6 : index
    %75 = memref.load %arg1[%74, %c6_22] : memref<24x8xi32, #tpu.memory_space<smem>>
    %76 = arith.index_cast %75 : i32 to index
    %c0_23 = arith.constant 0 : index
    %77 = vector.load %arg2[%76, %c0_23] : memref<32x128xf32, #tpu.memory_space<vmem>>, vector<1x128xf32>
    %78 = arith.maximumf %73, %77 : vector<1x128xf32>
    %79 = arith.index_cast %44 : i32 to index
    %c7_24 = arith.constant 7 : index
    %80 = memref.load %arg1[%79, %c7_24] : memref<24x8xi32, #tpu.memory_space<smem>>
    %81 = arith.index_cast %80 : i32 to index
    %c0_25 = arith.constant 0 : index
    %82 = vector.load %arg2[%81, %c0_25] : memref<32x128xf32, #tpu.memory_space<vmem>>, vector<1x128xf32>
    %83 = arith.maximumf %78, %82 : vector<1x128xf32>
    %84 = arith.index_cast %c0_i32 : i32 to index
    %c0_26 = arith.constant 0 : index
    %85 = vector.load %arg5[%84, %c0_26] : memref<8x128xf32, #tpu.memory_space<vmem>>, vector<1x128xf32>
    tpu.vector_store %arg5[%84, %c0_26], %83 {strides = array<i32>} : memref<8x128xf32, #tpu.memory_space<vmem>>, vector<1x128xf32>,
    %c16_i32 = arith.constant 16 : i32
    %86 = arith.addi %c16_i32, %0 : i32
    %87 = arith.addi %86, %c0_i32 : i32
    %88 = arith.index_cast %87 : i32 to index
    %c0_27 = arith.constant 0 : index
    %89 = memref.load %arg1[%88, %c0_27] : memref<24x8xi32, #tpu.memory_space<smem>>
    %90 = arith.index_cast %89 : i32 to index
    %c0_28 = arith.constant 0 : index
    %91 = vector.load %arg2[%90, %c0_28] : memref<32x128xf32, #tpu.memory_space<vmem>>, vector<1x128xf32>
    %92 = arith.index_cast %87 : i32 to index
    %c1_29 = arith.constant 1 : index
    %93 = memref.load %arg1[%92, %c1_29] : memref<24x8xi32, #tpu.memory_space<smem>>
    %94 = arith.index_cast %93 : i32 to index
    %c0_30 = arith.constant 0 : index
    %95 = vector.load %arg2[%94, %c0_30] : memref<32x128xf32, #tpu.memory_space<vmem>>, vector<1x128xf32>
    %96 = arith.maximumf %91, %95 : vector<1x128xf32>
    %97 = arith.index_cast %87 : i32 to index
    %c2_31 = arith.constant 2 : index
    %98 = memref.load %arg1[%97, %c2_31] : memref<24x8xi32, #tpu.memory_space<smem>>
    %99 = arith.index_cast %98 : i32 to index
    %c0_32 = arith.constant 0 : index
    %100 = vector.load %arg2[%99, %c0_32] : memref<32x128xf32, #tpu.memory_space<vmem>>, vector<1x128xf32>
    %101 = arith.maximumf %96, %100 : vector<1x128xf32>
    %102 = arith.index_cast %87 : i32 to index
    %c3_33 = arith.constant 3 : index
    %103 = memref.load %arg1[%102, %c3_33] : memref<24x8xi32, #tpu.memory_space<smem>>
    %104 = arith.index_cast %103 : i32 to index
    %c0_34 = arith.constant 0 : index
    %105 = vector.load %arg2[%104, %c0_34] : memref<32x128xf32, #tpu.memory_space<vmem>>, vector<1x128xf32>
    %106 = arith.maximumf %101, %105 : vector<1x128xf32>
    %107 = arith.index_cast %87 : i32 to index
    %c4_35 = arith.constant 4 : index
    %108 = memref.load %arg1[%107, %c4_35] : memref<24x8xi32, #tpu.memory_space<smem>>
    %109 = arith.index_cast %108 : i32 to index
    %c0_36 = arith.constant 0 : index
    %110 = vector.load %arg2[%109, %c0_36] : memref<32x128xf32, #tpu.memory_space<vmem>>, vector<1x128xf32>
    %111 = arith.maximumf %106, %110 : vector<1x128xf32>
    %112 = arith.index_cast %87 : i32 to index
    %c5_37 = arith.constant 5 : index
    %113 = memref.load %arg1[%112, %c5_37] : memref<24x8xi32, #tpu.memory_space<smem>>
    %114 = arith.index_cast %113 : i32 to index
    %c0_38 = arith.constant 0 : index
    %115 = vector.load %arg2[%114, %c0_38] : memref<32x128xf32, #tpu.memory_space<vmem>>, vector<1x128xf32>
    %116 = arith.maximumf %111, %115 : vector<1x128xf32>
    %117 = arith.index_cast %87 : i32 to index
    %c6_39 = arith.constant 6 : index
    %118 = memref.load %arg1[%117, %c6_39] : memref<24x8xi32, #tpu.memory_space<smem>>
    %119 = arith.index_cast %118 : i32 to index
    %c0_40 = arith.constant 0 : index
    %120 = vector.load %arg2[%119, %c0_40] : memref<32x128xf32, #tpu.memory_space<vmem>>, vector<1x128xf32>
    %121 = arith.maximumf %116, %120 : vector<1x128xf32>
    %122 = arith.index_cast %87 : i32 to index
    %c7_41 = arith.constant 7 : index
    %123 = memref.load %arg1[%122, %c7_41] : memref<24x8xi32, #tpu.memory_space<smem>>
    %124 = arith.index_cast %123 : i32 to index
    %c0_42 = arith.constant 0 : index
    %125 = vector.load %arg2[%124, %c0_42] : memref<32x128xf32, #tpu.memory_space<vmem>>, vector<1x128xf32>
    %126 = arith.maximumf %121, %125 : vector<1x128xf32>
    %127 = arith.index_cast %c0_i32 : i32 to index
    %c0_43 = arith.constant 0 : index
    %128 = vector.load %arg6[%127, %c0_43] : memref<8x128xf32, #tpu.memory_space<vmem>>, vector<1x128xf32>
    tpu.vector_store %arg6[%127, %c0_43], %126 {strides = array<i32>} : memref<8x128xf32, #tpu.memory_space<vmem>>, vector<1x128xf32>,
    %c1_i32 = arith.constant 1 : i32
    %129 = arith.addi %0, %c1_i32 : i32
    %130 = arith.index_cast %129 : i32 to index
    %c0_44 = arith.constant 0 : index
    %131 = memref.load %arg1[%130, %c0_44] : memref<24x8xi32, #tpu.memory_space<smem>>
    %132 = arith.index_cast %131 : i32 to index
    %c0_45 = arith.constant 0 : index
    %133 = vector.load %arg2[%132, %c0_45] : memref<32x128xf32, #tpu.memory_space<vmem>>, vector<1x128xf32>
    %134 = arith.index_cast %129 : i32 to index
    %c1_46 = arith.constant 1 : index
    %135 = memref.load %arg1[%134, %c1_46] : memref<24x8xi32, #tpu.memory_space<smem>>
    %136 = arith.index_cast %135 : i32 to index
    %c0_47 = arith.constant 0 : index
    %137 = vector.load %arg2[%136, %c0_47] : memref<32x128xf32, #tpu.memory_space<vmem>>, vector<1x128xf32>
    %138 = arith.maximumf %133, %137 : vector<1x128xf32>
    %139 = arith.index_cast %129 : i32 to index
    %c2_48 = arith.constant 2 : index
    %140 = memref.load %arg1[%139, %c2_48] : memref<24x8xi32, #tpu.memory_space<smem>>
    %141 = arith.index_cast %140 : i32 to index
    %c0_49 = arith.constant 0 : index
    %142 = vector.load %arg2[%141, %c0_49] : memref<32x128xf32, #tpu.memory_space<vmem>>, vector<1x128xf32>
    %143 = arith.maximumf %138, %142 : vector<1x128xf32>
    %144 = arith.index_cast %129 : i32 to index
    %c3_50 = arith.constant 3 : index
    %145 = memref.load %arg1[%144, %c3_50] : memref<24x8xi32, #tpu.memory_space<smem>>
    %146 = arith.index_cast %145 : i32 to index
    %c0_51 = arith.constant 0 : index
    %147 = vector.load %arg2[%146, %c0_51] : memref<32x128xf32, #tpu.memory_space<vmem>>, vector<1x128xf32>
    %148 = arith.maximumf %143, %147 : vector<1x128xf32>
    %149 = arith.index_cast %129 : i32 to index
    %c4_52 = arith.constant 4 : index
    %150 = memref.load %arg1[%149, %c4_52] : memref<24x8xi32, #tpu.memory_space<smem>>
    %151 = arith.index_cast %150 : i32 to index
    %c0_53 = arith.constant 0 : index
    %152 = vector.load %arg2[%151, %c0_53] : memref<32x128xf32, #tpu.memory_space<vmem>>, vector<1x128xf32>
    %153 = arith.maximumf %148, %152 : vector<1x128xf32>
    %154 = arith.index_cast %129 : i32 to index
    %c5_54 = arith.constant 5 : index
    %155 = memref.load %arg1[%154, %c5_54] : memref<24x8xi32, #tpu.memory_space<smem>>
    %156 = arith.index_cast %155 : i32 to index
    %c0_55 = arith.constant 0 : index
    %157 = vector.load %arg2[%156, %c0_55] : memref<32x128xf32, #tpu.memory_space<vmem>>, vector<1x128xf32>
    %158 = arith.maximumf %153, %157 : vector<1x128xf32>
    %159 = arith.index_cast %129 : i32 to index
    %c6_56 = arith.constant 6 : index
    %160 = memref.load %arg1[%159, %c6_56] : memref<24x8xi32, #tpu.memory_space<smem>>
    %161 = arith.index_cast %160 : i32 to index
    %c0_57 = arith.constant 0 : index
    %162 = vector.load %arg2[%161, %c0_57] : memref<32x128xf32, #tpu.memory_space<vmem>>, vector<1x128xf32>
    %163 = arith.maximumf %158, %162 : vector<1x128xf32>
    %164 = arith.index_cast %129 : i32 to index
    %c7_58 = arith.constant 7 : index
    %165 = memref.load %arg1[%164, %c7_58] : memref<24x8xi32, #tpu.memory_space<smem>>
    %166 = arith.index_cast %165 : i32 to index
    %c0_59 = arith.constant 0 : index
    %167 = vector.load %arg2[%166, %c0_59] : memref<32x128xf32, #tpu.memory_space<vmem>>, vector<1x128xf32>
    %168 = arith.maximumf %163, %167 : vector<1x128xf32>
    %169 = arith.index_cast %c1_i32 : i32 to index
    %c0_60 = arith.constant 0 : index
    %170 = vector.load %arg4[%169, %c0_60] : memref<8x128xf32, #tpu.memory_space<vmem>>, vector<1x128xf32>
    tpu.vector_store %arg4[%169, %c0_60], %168 {strides = array<i32>} : memref<8x128xf32, #tpu.memory_space<vmem>>, vector<1x128xf32>,
    %c8_i32_61 = arith.constant 8 : i32
    %171 = arith.addi %c8_i32_61, %0 : i32
    %172 = arith.addi %171, %c1_i32 : i32
    %173 = arith.index_cast %172 : i32 to index
    %c0_62 = arith.constant 0 : index
    %174 = memref.load %arg1[%173, %c0_62] : memref<24x8xi32, #tpu.memory_space<smem>>
    %175 = arith.index_cast %174 : i32 to index
    %c0_63 = arith.constant 0 : index
    %176 = vector.load %arg2[%175, %c0_63] : memref<32x128xf32, #tpu.memory_space<vmem>>, vector<1x128xf32>
    %177 = arith.index_cast %172 : i32 to index
    %c1_64 = arith.constant 1 : index
    %178 = memref.load %arg1[%177, %c1_64] : memref<24x8xi32, #tpu.memory_space<smem>>
    %179 = arith.index_cast %178 : i32 to index
    %c0_65 = arith.constant 0 : index
    %180 = vector.load %arg2[%179, %c0_65] : memref<32x128xf32, #tpu.memory_space<vmem>>, vector<1x128xf32>
    %181 = arith.maximumf %176, %180 : vector<1x128xf32>
    %182 = arith.index_cast %172 : i32 to index
    %c2_66 = arith.constant 2 : index
    %183 = memref.load %arg1[%182, %c2_66] : memref<24x8xi32, #tpu.memory_space<smem>>
    %184 = arith.index_cast %183 : i32 to index
    %c0_67 = arith.constant 0 : index
    %185 = vector.load %arg2[%184, %c0_67] : memref<32x128xf32, #tpu.memory_space<vmem>>, vector<1x128xf32>
    %186 = arith.maximumf %181, %185 : vector<1x128xf32>
    %187 = arith.index_cast %172 : i32 to index
    %c3_68 = arith.constant 3 : index
    %188 = memref.load %arg1[%187, %c3_68] : memref<24x8xi32, #tpu.memory_space<smem>>
    %189 = arith.index_cast %188 : i32 to index
    %c0_69 = arith.constant 0 : index
    %190 = vector.load %arg2[%189, %c0_69] : memref<32x128xf32, #tpu.memory_space<vmem>>, vector<1x128xf32>
    %191 = arith.maximumf %186, %190 : vector<1x128xf32>
    %192 = arith.index_cast %172 : i32 to index
    %c4_70 = arith.constant 4 : index
    %193 = memref.load %arg1[%192, %c4_70] : memref<24x8xi32, #tpu.memory_space<smem>>
    %194 = arith.index_cast %193 : i32 to index
    %c0_71 = arith.constant 0 : index
    %195 = vector.load %arg2[%194, %c0_71] : memref<32x128xf32, #tpu.memory_space<vmem>>, vector<1x128xf32>
    %196 = arith.maximumf %191, %195 : vector<1x128xf32>
    %197 = arith.index_cast %172 : i32 to index
    %c5_72 = arith.constant 5 : index
    %198 = memref.load %arg1[%197, %c5_72] : memref<24x8xi32, #tpu.memory_space<smem>>
    %199 = arith.index_cast %198 : i32 to index
    %c0_73 = arith.constant 0 : index
    %200 = vector.load %arg2[%199, %c0_73] : memref<32x128xf32, #tpu.memory_space<vmem>>, vector<1x128xf32>
    %201 = arith.maximumf %196, %200 : vector<1x128xf32>
    %202 = arith.index_cast %172 : i32 to index
    %c6_74 = arith.constant 6 : index
    %203 = memref.load %arg1[%202, %c6_74] : memref<24x8xi32, #tpu.memory_space<smem>>
    %204 = arith.index_cast %203 : i32 to index
    %c0_75 = arith.constant 0 : index
    %205 = vector.load %arg2[%204, %c0_75] : memref<32x128xf32, #tpu.memory_space<vmem>>, vector<1x128xf32>
    %206 = arith.maximumf %201, %205 : vector<1x128xf32>
    %207 = arith.index_cast %172 : i32 to index
    %c7_76 = arith.constant 7 : index
    %208 = memref.load %arg1[%207, %c7_76] : memref<24x8xi32, #tpu.memory_space<smem>>
    %209 = arith.index_cast %208 : i32 to index
    %c0_77 = arith.constant 0 : index
    %210 = vector.load %arg2[%209, %c0_77] : memref<32x128xf32, #tpu.memory_space<vmem>>, vector<1x128xf32>
    %211 = arith.maximumf %206, %210 : vector<1x128xf32>
    %212 = arith.index_cast %c1_i32 : i32 to index
    %c0_78 = arith.constant 0 : index
    %213 = vector.load %arg5[%212, %c0_78] : memref<8x128xf32, #tpu.memory_space<vmem>>, vector<1x128xf32>
    tpu.vector_store %arg5[%212, %c0_78], %211 {strides = array<i32>} : memref<8x128xf32, #tpu.memory_space<vmem>>, vector<1x128xf32>,
    %c16_i32_79 = arith.constant 16 : i32
    %214 = arith.addi %c16_i32_79, %0 : i32
    %215 = arith.addi %214, %c1_i32 : i32
    %216 = arith.index_cast %215 : i32 to index
    %c0_80 = arith.constant 0 : index
    %217 = memref.load %arg1[%216, %c0_80] : memref<24x8xi32, #tpu.memory_space<smem>>
    %218 = arith.index_cast %217 : i32 to index
    %c0_81 = arith.constant 0 : index
    %219 = vector.load %arg2[%218, %c0_81] : memref<32x128xf32, #tpu.memory_space<vmem>>, vector<1x128xf32>
    %220 = arith.index_cast %215 : i32 to index
    %c1_82 = arith.constant 1 : index
    %221 = memref.load %arg1[%220, %c1_82] : memref<24x8xi32, #tpu.memory_space<smem>>
    %222 = arith.index_cast %221 : i32 to index
    %c0_83 = arith.constant 0 : index
    %223 = vector.load %arg2[%222, %c0_83] : memref<32x128xf32, #tpu.memory_space<vmem>>, vector<1x128xf32>
    %224 = arith.maximumf %219, %223 : vector<1x128xf32>
    %225 = arith.index_cast %215 : i32 to index
    %c2_84 = arith.constant 2 : index
    %226 = memref.load %arg1[%225, %c2_84] : memref<24x8xi32, #tpu.memory_space<smem>>
    %227 = arith.index_cast %226 : i32 to index
    %c0_85 = arith.constant 0 : index
    %228 = vector.load %arg2[%227, %c0_85] : memref<32x128xf32, #tpu.memory_space<vmem>>, vector<1x128xf32>
    %229 = arith.maximumf %224, %228 : vector<1x128xf32>
    %230 = arith.index_cast %215 : i32 to index
    %c3_86 = arith.constant 3 : index
    %231 = memref.load %arg1[%230, %c3_86] : memref<24x8xi32, #tpu.memory_space<smem>>
    %232 = arith.index_cast %231 : i32 to index
    %c0_87 = arith.constant 0 : index
    %233 = vector.load %arg2[%232, %c0_87] : memref<32x128xf32, #tpu.memory_space<vmem>>, vector<1x128xf32>
    %234 = arith.maximumf %229, %233 : vector<1x128xf32>
    %235 = arith.index_cast %215 : i32 to index
    %c4_88 = arith.constant 4 : index
    %236 = memref.load %arg1[%235, %c4_88] : memref<24x8xi32, #tpu.memory_space<smem>>
    %237 = arith.index_cast %236 : i32 to index
    %c0_89 = arith.constant 0 : index
    %238 = vector.load %arg2[%237, %c0_89] : memref<32x128xf32, #tpu.memory_space<vmem>>, vector<1x128xf32>
    %239 = arith.maximumf %234, %238 : vector<1x128xf32>
    %240 = arith.index_cast %215 : i32 to index
    %c5_90 = arith.constant 5 : index
    %241 = memref.load %arg1[%240, %c5_90] : memref<24x8xi32, #tpu.memory_space<smem>>
    %242 = arith.index_cast %241 : i32 to index
    %c0_91 = arith.constant 0 : index
    %243 = vector.load %arg2[%242, %c0_91] : memref<32x128xf32, #tpu.memory_space<vmem>>, vector<1x128xf32>
    %244 = arith.maximumf %239, %243 : vector<1x128xf32>
    %245 = arith.index_cast %215 : i32 to index
    %c6_92 = arith.constant 6 : index
    %246 = memref.load %arg1[%245, %c6_92] : memref<24x8xi32, #tpu.memory_space<smem>>
    %247 = arith.index_cast %246 : i32 to index
    %c0_93 = arith.constant 0 : index
    %248 = vector.load %arg2[%247, %c0_93] : memref<32x128xf32, #tpu.memory_space<vmem>>, vector<1x128xf32>
    %249 = arith.maximumf %244, %248 : vector<1x128xf32>
    %250 = arith.index_cast %215 : i32 to index
    %c7_94 = arith.constant 7 : index
    %251 = memref.load %arg1[%250, %c7_94] : memref<24x8xi32, #tpu.memory_space<smem>>
    %252 = arith.index_cast %251 : i32 to index
    %c0_95 = arith.constant 0 : index
    %253 = vector.load %arg2[%252, %c0_95] : memref<32x128xf32, #tpu.memory_space<vmem>>, vector<1x128xf32>
    %254 = arith.maximumf %249, %253 : vector<1x128xf32>
    %255 = arith.index_cast %c1_i32 : i32 to index
    %c0_96 = arith.constant 0 : index
    %256 = vector.load %arg6[%255, %c0_96] : memref<8x128xf32, #tpu.memory_space<vmem>>, vector<1x128xf32>
    tpu.vector_store %arg6[%255, %c0_96], %254 {strides = array<i32>} : memref<8x128xf32, #tpu.memory_space<vmem>>, vector<1x128xf32>,
    %c2_i32 = arith.constant 2 : i32
    %257 = arith.addi %0, %c2_i32 : i32
    %258 = arith.index_cast %257 : i32 to index
    %c0_97 = arith.constant 0 : index
    %259 = memref.load %arg1[%258, %c0_97] : memref<24x8xi32, #tpu.memory_space<smem>>
    %260 = arith.index_cast %259 : i32 to index
    %c0_98 = arith.constant 0 : index
    %261 = vector.load %arg2[%260, %c0_98] : memref<32x128xf32, #tpu.memory_space<vmem>>, vector<1x128xf32>
    %262 = arith.index_cast %257 : i32 to index
    %c1_99 = arith.constant 1 : index
    %263 = memref.load %arg1[%262, %c1_99] : memref<24x8xi32, #tpu.memory_space<smem>>
    %264 = arith.index_cast %263 : i32 to index
    %c0_100 = arith.constant 0 : index
    %265 = vector.load %arg2[%264, %c0_100] : memref<32x128xf32, #tpu.memory_space<vmem>>, vector<1x128xf32>
    %266 = arith.maximumf %261, %265 : vector<1x128xf32>
    %267 = arith.index_cast %257 : i32 to index
    %c2_101 = arith.constant 2 : index
    %268 = memref.load %arg1[%267, %c2_101] : memref<24x8xi32, #tpu.memory_space<smem>>
    %269 = arith.index_cast %268 : i32 to index
    %c0_102 = arith.constant 0 : index
    %270 = vector.load %arg2[%269, %c0_102] : memref<32x128xf32, #tpu.memory_space<vmem>>, vector<1x128xf32>
    %271 = arith.maximumf %266, %270 : vector<1x128xf32>
    %272 = arith.index_cast %257 : i32 to index
    %c3_103 = arith.constant 3 : index
    %273 = memref.load %arg1[%272, %c3_103] : memref<24x8xi32, #tpu.memory_space<smem>>
    %274 = arith.index_cast %273 : i32 to index
    %c0_104 = arith.constant 0 : index
    %275 = vector.load %arg2[%274, %c0_104] : memref<32x128xf32, #tpu.memory_space<vmem>>, vector<1x128xf32>
    %276 = arith.maximumf %271, %275 : vector<1x128xf32>
    %277 = arith.index_cast %257 : i32 to index
    %c4_105 = arith.constant 4 : index
    %278 = memref.load %arg1[%277, %c4_105] : memref<24x8xi32, #tpu.memory_space<smem>>
    %279 = arith.index_cast %278 : i32 to index
    %c0_106 = arith.constant 0 : index
    %280 = vector.load %arg2[%279, %c0_106] : memref<32x128xf32, #tpu.memory_space<vmem>>, vector<1x128xf32>
    %281 = arith.maximumf %276, %280 : vector<1x128xf32>
    %282 = arith.index_cast %257 : i32 to index
    %c5_107 = arith.constant 5 : index
    %283 = memref.load %arg1[%282, %c5_107] : memref<24x8xi32, #tpu.memory_space<smem>>
    %284 = arith.index_cast %283 : i32 to index
    %c0_108 = arith.constant 0 : index
    %285 = vector.load %arg2[%284, %c0_108] : memref<32x128xf32, #tpu.memory_space<vmem>>, vector<1x128xf32>
    %286 = arith.maximumf %281, %285 : vector<1x128xf32>
    %287 = arith.index_cast %257 : i32 to index
    %c6_109 = arith.constant 6 : index
    %288 = memref.load %arg1[%287, %c6_109] : memref<24x8xi32, #tpu.memory_space<smem>>
    %289 = arith.index_cast %288 : i32 to index
    %c0_110 = arith.constant 0 : index
    %290 = vector.load %arg2[%289, %c0_110] : memref<32x128xf32, #tpu.memory_space<vmem>>, vector<1x128xf32>
    %291 = arith.maximumf %286, %290 : vector<1x128xf32>
    %292 = arith.index_cast %257 : i32 to index
    %c7_111 = arith.constant 7 : index
    %293 = memref.load %arg1[%292, %c7_111] : memref<24x8xi32, #tpu.memory_space<smem>>
    %294 = arith.index_cast %293 : i32 to index
    %c0_112 = arith.constant 0 : index
    %295 = vector.load %arg2[%294, %c0_112] : memref<32x128xf32, #tpu.memory_space<vmem>>, vector<1x128xf32>
    %296 = arith.maximumf %291, %295 : vector<1x128xf32>
    %297 = arith.index_cast %c2_i32 : i32 to index
    %c0_113 = arith.constant 0 : index
    %298 = vector.load %arg4[%297, %c0_113] : memref<8x128xf32, #tpu.memory_space<vmem>>, vector<1x128xf32>
    tpu.vector_store %arg4[%297, %c0_113], %296 {strides = array<i32>} : memref<8x128xf32, #tpu.memory_space<vmem>>, vector<1x128xf32>,
    %c8_i32_114 = arith.constant 8 : i32
    %299 = arith.addi %c8_i32_114, %0 : i32
    %300 = arith.addi %299, %c2_i32 : i32
    %301 = arith.index_cast %300 : i32 to index
    %c0_115 = arith.constant 0 : index
    %302 = memref.load %arg1[%301, %c0_115] : memref<24x8xi32, #tpu.memory_space<smem>>
    %303 = arith.index_cast %302 : i32 to index
    %c0_116 = arith.constant 0 : index
    %304 = vector.load %arg2[%303, %c0_116] : memref<32x128xf32, #tpu.memory_space<vmem>>, vector<1x128xf32>
    %305 = arith.index_cast %300 : i32 to index
    %c1_117 = arith.constant 1 : index
    %306 = memref.load %arg1[%305, %c1_117] : memref<24x8xi32, #tpu.memory_space<smem>>
    %307 = arith.index_cast %306 : i32 to index
    %c0_118 = arith.constant 0 : index
    %308 = vector.load %arg2[%307, %c0_118] : memref<32x128xf32, #tpu.memory_space<vmem>>, vector<1x128xf32>
    %309 = arith.maximumf %304, %308 : vector<1x128xf32>
    %310 = arith.index_cast %300 : i32 to index
    %c2_119 = arith.constant 2 : index
    %311 = memref.load %arg1[%310, %c2_119] : memref<24x8xi32, #tpu.memory_space<smem>>
    %312 = arith.index_cast %311 : i32 to index
    %c0_120 = arith.constant 0 : index
    %313 = vector.load %arg2[%312, %c0_120] : memref<32x128xf32, #tpu.memory_space<vmem>>, vector<1x128xf32>
    %314 = arith.maximumf %309, %313 : vector<1x128xf32>
    %315 = arith.index_cast %300 : i32 to index
    %c3_121 = arith.constant 3 : index
    %316 = memref.load %arg1[%315, %c3_121] : memref<24x8xi32, #tpu.memory_space<smem>>
    %317 = arith.index_cast %316 : i32 to index
    %c0_122 = arith.constant 0 : index
    %318 = vector.load %arg2[%317, %c0_122] : memref<32x128xf32, #tpu.memory_space<vmem>>, vector<1x128xf32>
    %319 = arith.maximumf %314, %318 : vector<1x128xf32>
    %320 = arith.index_cast %300 : i32 to index
    %c4_123 = arith.constant 4 : index
    %321 = memref.load %arg1[%320, %c4_123] : memref<24x8xi32, #tpu.memory_space<smem>>
    %322 = arith.index_cast %321 : i32 to index
    %c0_124 = arith.constant 0 : index
    %323 = vector.load %arg2[%322, %c0_124] : memref<32x128xf32, #tpu.memory_space<vmem>>, vector<1x128xf32>
    %324 = arith.maximumf %319, %323 : vector<1x128xf32>
    %325 = arith.index_cast %300 : i32 to index
    %c5_125 = arith.constant 5 : index
    %326 = memref.load %arg1[%325, %c5_125] : memref<24x8xi32, #tpu.memory_space<smem>>
    %327 = arith.index_cast %326 : i32 to index
    %c0_126 = arith.constant 0 : index
    %328 = vector.load %arg2[%327, %c0_126] : memref<32x128xf32, #tpu.memory_space<vmem>>, vector<1x128xf32>
    %329 = arith.maximumf %324, %328 : vector<1x128xf32>
    %330 = arith.index_cast %300 : i32 to index
    %c6_127 = arith.constant 6 : index
    %331 = memref.load %arg1[%330, %c6_127] : memref<24x8xi32, #tpu.memory_space<smem>>
    %332 = arith.index_cast %331 : i32 to index
    %c0_128 = arith.constant 0 : index
    %333 = vector.load %arg2[%332, %c0_128] : memref<32x128xf32, #tpu.memory_space<vmem>>, vector<1x128xf32>
    %334 = arith.maximumf %329, %333 : vector<1x128xf32>
    %335 = arith.index_cast %300 : i32 to index
    %c7_129 = arith.constant 7 : index
    %336 = memref.load %arg1[%335, %c7_129] : memref<24x8xi32, #tpu.memory_space<smem>>
    %337 = arith.index_cast %336 : i32 to index
    %c0_130 = arith.constant 0 : index
    %338 = vector.load %arg2[%337, %c0_130] : memref<32x128xf32, #tpu.memory_space<vmem>>, vector<1x128xf32>
    %339 = arith.maximumf %334, %338 : vector<1x128xf32>
    %340 = arith.index_cast %c2_i32 : i32 to index
    %c0_131 = arith.constant 0 : index
    %341 = vector.load %arg5[%340, %c0_131] : memref<8x128xf32, #tpu.memory_space<vmem>>, vector<1x128xf32>
    tpu.vector_store %arg5[%340, %c0_131], %339 {strides = array<i32>} : memref<8x128xf32, #tpu.memory_space<vmem>>, vector<1x128xf32>,
    %c16_i32_132 = arith.constant 16 : i32
    %342 = arith.addi %c16_i32_132, %0 : i32
    %343 = arith.addi %342, %c2_i32 : i32
    %344 = arith.index_cast %343 : i32 to index
    %c0_133 = arith.constant 0 : index
    %345 = memref.load %arg1[%344, %c0_133] : memref<24x8xi32, #tpu.memory_space<smem>>
    %346 = arith.index_cast %345 : i32 to index
    %c0_134 = arith.constant 0 : index
    %347 = vector.load %arg2[%346, %c0_134] : memref<32x128xf32, #tpu.memory_space<vmem>>, vector<1x128xf32>
    %348 = arith.index_cast %343 : i32 to index
    %c1_135 = arith.constant 1 : index
    %349 = memref.load %arg1[%348, %c1_135] : memref<24x8xi32, #tpu.memory_space<smem>>
    %350 = arith.index_cast %349 : i32 to index
    %c0_136 = arith.constant 0 : index
    %351 = vector.load %arg2[%350, %c0_136] : memref<32x128xf32, #tpu.memory_space<vmem>>, vector<1x128xf32>
    %352 = arith.maximumf %347, %351 : vector<1x128xf32>
    %353 = arith.index_cast %343 : i32 to index
    %c2_137 = arith.constant 2 : index
    %354 = memref.load %arg1[%353, %c2_137] : memref<24x8xi32, #tpu.memory_space<smem>>
    %355 = arith.index_cast %354 : i32 to index
    %c0_138 = arith.constant 0 : index
    %356 = vector.load %arg2[%355, %c0_138] : memref<32x128xf32, #tpu.memory_space<vmem>>, vector<1x128xf32>
    %357 = arith.maximumf %352, %356 : vector<1x128xf32>
    %358 = arith.index_cast %343 : i32 to index
    %c3_139 = arith.constant 3 : index
    %359 = memref.load %arg1[%358, %c3_139] : memref<24x8xi32, #tpu.memory_space<smem>>
    %360 = arith.index_cast %359 : i32 to index
    %c0_140 = arith.constant 0 : index
    %361 = vector.load %arg2[%360, %c0_140] : memref<32x128xf32, #tpu.memory_space<vmem>>, vector<1x128xf32>
    %362 = arith.maximumf %357, %361 : vector<1x128xf32>
    %363 = arith.index_cast %343 : i32 to index
    %c4_141 = arith.constant 4 : index
    %364 = memref.load %arg1[%363, %c4_141] : memref<24x8xi32, #tpu.memory_space<smem>>
    %365 = arith.index_cast %364 : i32 to index
    %c0_142 = arith.constant 0 : index
    %366 = vector.load %arg2[%365, %c0_142] : memref<32x128xf32, #tpu.memory_space<vmem>>, vector<1x128xf32>
    %367 = arith.maximumf %362, %366 : vector<1x128xf32>
    %368 = arith.index_cast %343 : i32 to index
    %c5_143 = arith.constant 5 : index
    %369 = memref.load %arg1[%368, %c5_143] : memref<24x8xi32, #tpu.memory_space<smem>>
    %370 = arith.index_cast %369 : i32 to index
    %c0_144 = arith.constant 0 : index
    %371 = vector.load %arg2[%370, %c0_144] : memref<32x128xf32, #tpu.memory_space<vmem>>, vector<1x128xf32>
    %372 = arith.maximumf %367, %371 : vector<1x128xf32>
    %373 = arith.index_cast %343 : i32 to index
    %c6_145 = arith.constant 6 : index
    %374 = memref.load %arg1[%373, %c6_145] : memref<24x8xi32, #tpu.memory_space<smem>>
    %375 = arith.index_cast %374 : i32 to index
    %c0_146 = arith.constant 0 : index
    %376 = vector.load %arg2[%375, %c0_146] : memref<32x128xf32, #tpu.memory_space<vmem>>, vector<1x128xf32>
    %377 = arith.maximumf %372, %376 : vector<1x128xf32>
    %378 = arith.index_cast %343 : i32 to index
    %c7_147 = arith.constant 7 : index
    %379 = memref.load %arg1[%378, %c7_147] : memref<24x8xi32, #tpu.memory_space<smem>>
    %380 = arith.index_cast %379 : i32 to index
    %c0_148 = arith.constant 0 : index
    %381 = vector.load %arg2[%380, %c0_148] : memref<32x128xf32, #tpu.memory_space<vmem>>, vector<1x128xf32>
    %382 = arith.maximumf %377, %381 : vector<1x128xf32>
    %383 = arith.index_cast %c2_i32 : i32 to index
    %c0_149 = arith.constant 0 : index
    %384 = vector.load %arg6[%383, %c0_149] : memref<8x128xf32, #tpu.memory_space<vmem>>, vector<1x128xf32>
    tpu.vector_store %arg6[%383, %c0_149], %382 {strides = array<i32>} : memref<8x128xf32, #tpu.memory_space<vmem>>, vector<1x128xf32>,
    %c3_i32 = arith.constant 3 : i32
    %385 = arith.addi %0, %c3_i32 : i32
    %386 = arith.index_cast %385 : i32 to index
    %c0_150 = arith.constant 0 : index
    %387 = memref.load %arg1[%386, %c0_150] : memref<24x8xi32, #tpu.memory_space<smem>>
    %388 = arith.index_cast %387 : i32 to index
    %c0_151 = arith.constant 0 : index
    %389 = vector.load %arg2[%388, %c0_151] : memref<32x128xf32, #tpu.memory_space<vmem>>, vector<1x128xf32>
    %390 = arith.index_cast %385 : i32 to index
    %c1_152 = arith.constant 1 : index
    %391 = memref.load %arg1[%390, %c1_152] : memref<24x8xi32, #tpu.memory_space<smem>>
    %392 = arith.index_cast %391 : i32 to index
    %c0_153 = arith.constant 0 : index
    %393 = vector.load %arg2[%392, %c0_153] : memref<32x128xf32, #tpu.memory_space<vmem>>, vector<1x128xf32>
    %394 = arith.maximumf %389, %393 : vector<1x128xf32>
    %395 = arith.index_cast %385 : i32 to index
    %c2_154 = arith.constant 2 : index
    %396 = memref.load %arg1[%395, %c2_154] : memref<24x8xi32, #tpu.memory_space<smem>>
    %397 = arith.index_cast %396 : i32 to index
    %c0_155 = arith.constant 0 : index
    %398 = vector.load %arg2[%397, %c0_155] : memref<32x128xf32, #tpu.memory_space<vmem>>, vector<1x128xf32>
    %399 = arith.maximumf %394, %398 : vector<1x128xf32>
    %400 = arith.index_cast %385 : i32 to index
    %c3_156 = arith.constant 3 : index
    %401 = memref.load %arg1[%400, %c3_156] : memref<24x8xi32, #tpu.memory_space<smem>>
    %402 = arith.index_cast %401 : i32 to index
    %c0_157 = arith.constant 0 : index
    %403 = vector.load %arg2[%402, %c0_157] : memref<32x128xf32, #tpu.memory_space<vmem>>, vector<1x128xf32>
    %404 = arith.maximumf %399, %403 : vector<1x128xf32>
    %405 = arith.index_cast %385 : i32 to index
    %c4_158 = arith.constant 4 : index
    %406 = memref.load %arg1[%405, %c4_158] : memref<24x8xi32, #tpu.memory_space<smem>>
    %407 = arith.index_cast %406 : i32 to index
    %c0_159 = arith.constant 0 : index
    %408 = vector.load %arg2[%407, %c0_159] : memref<32x128xf32, #tpu.memory_space<vmem>>, vector<1x128xf32>
    %409 = arith.maximumf %404, %408 : vector<1x128xf32>
    %410 = arith.index_cast %385 : i32 to index
    %c5_160 = arith.constant 5 : index
    %411 = memref.load %arg1[%410, %c5_160] : memref<24x8xi32, #tpu.memory_space<smem>>
    %412 = arith.index_cast %411 : i32 to index
    %c0_161 = arith.constant 0 : index
    %413 = vector.load %arg2[%412, %c0_161] : memref<32x128xf32, #tpu.memory_space<vmem>>, vector<1x128xf32>
    %414 = arith.maximumf %409, %413 : vector<1x128xf32>
    %415 = arith.index_cast %385 : i32 to index
    %c6_162 = arith.constant 6 : index
    %416 = memref.load %arg1[%415, %c6_162] : memref<24x8xi32, #tpu.memory_space<smem>>
    %417 = arith.index_cast %416 : i32 to index
    %c0_163 = arith.constant 0 : index
    %418 = vector.load %arg2[%417, %c0_163] : memref<32x128xf32, #tpu.memory_space<vmem>>, vector<1x128xf32>
    %419 = arith.maximumf %414, %418 : vector<1x128xf32>
    %420 = arith.index_cast %385 : i32 to index
    %c7_164 = arith.constant 7 : index
    %421 = memref.load %arg1[%420, %c7_164] : memref<24x8xi32, #tpu.memory_space<smem>>
    %422 = arith.index_cast %421 : i32 to index
    %c0_165 = arith.constant 0 : index
    %423 = vector.load %arg2[%422, %c0_165] : memref<32x128xf32, #tpu.memory_space<vmem>>, vector<1x128xf32>
    %424 = arith.maximumf %419, %423 : vector<1x128xf32>
    %425 = arith.index_cast %c3_i32 : i32 to index
    %c0_166 = arith.constant 0 : index
    %426 = vector.load %arg4[%425, %c0_166] : memref<8x128xf32, #tpu.memory_space<vmem>>, vector<1x128xf32>
    tpu.vector_store %arg4[%425, %c0_166], %424 {strides = array<i32>} : memref<8x128xf32, #tpu.memory_space<vmem>>, vector<1x128xf32>,
    %c8_i32_167 = arith.constant 8 : i32
    %427 = arith.addi %c8_i32_167, %0 : i32
    %428 = arith.addi %427, %c3_i32 : i32
    %429 = arith.index_cast %428 : i32 to index
    %c0_168 = arith.constant 0 : index
    %430 = memref.load %arg1[%429, %c0_168] : memref<24x8xi32, #tpu.memory_space<smem>>
    %431 = arith.index_cast %430 : i32 to index
    %c0_169 = arith.constant 0 : index
    %432 = vector.load %arg2[%431, %c0_169] : memref<32x128xf32, #tpu.memory_space<vmem>>, vector<1x128xf32>
    %433 = arith.index_cast %428 : i32 to index
    %c1_170 = arith.constant 1 : index
    %434 = memref.load %arg1[%433, %c1_170] : memref<24x8xi32, #tpu.memory_space<smem>>
    %435 = arith.index_cast %434 : i32 to index
    %c0_171 = arith.constant 0 : index
    %436 = vector.load %arg2[%435, %c0_171] : memref<32x128xf32, #tpu.memory_space<vmem>>, vector<1x128xf32>
    %437 = arith.maximumf %432, %436 : vector<1x128xf32>
    %438 = arith.index_cast %428 : i32 to index
    %c2_172 = arith.constant 2 : index
    %439 = memref.load %arg1[%438, %c2_172] : memref<24x8xi32, #tpu.memory_space<smem>>
    %440 = arith.index_cast %439 : i32 to index
    %c0_173 = arith.constant 0 : index
    %441 = vector.load %arg2[%440, %c0_173] : memref<32x128xf32, #tpu.memory_space<vmem>>, vector<1x128xf32>
    %442 = arith.maximumf %437, %441 : vector<1x128xf32>
    %443 = arith.index_cast %428 : i32 to index
    %c3_174 = arith.constant 3 : index
    %444 = memref.load %arg1[%443, %c3_174] : memref<24x8xi32, #tpu.memory_space<smem>>
    %445 = arith.index_cast %444 : i32 to index
    %c0_175 = arith.constant 0 : index
    %446 = vector.load %arg2[%445, %c0_175] : memref<32x128xf32, #tpu.memory_space<vmem>>, vector<1x128xf32>
    %447 = arith.maximumf %442, %446 : vector<1x128xf32>
    %448 = arith.index_cast %428 : i32 to index
    %c4_176 = arith.constant 4 : index
    %449 = memref.load %arg1[%448, %c4_176] : memref<24x8xi32, #tpu.memory_space<smem>>
    %450 = arith.index_cast %449 : i32 to index
    %c0_177 = arith.constant 0 : index
    %451 = vector.load %arg2[%450, %c0_177] : memref<32x128xf32, #tpu.memory_space<vmem>>, vector<1x128xf32>
    %452 = arith.maximumf %447, %451 : vector<1x128xf32>
    %453 = arith.index_cast %428 : i32 to index
    %c5_178 = arith.constant 5 : index
    %454 = memref.load %arg1[%453, %c5_178] : memref<24x8xi32, #tpu.memory_space<smem>>
    %455 = arith.index_cast %454 : i32 to index
    %c0_179 = arith.constant 0 : index
    %456 = vector.load %arg2[%455, %c0_179] : memref<32x128xf32, #tpu.memory_space<vmem>>, vector<1x128xf32>
    %457 = arith.maximumf %452, %456 : vector<1x128xf32>
    %458 = arith.index_cast %428 : i32 to index
    %c6_180 = arith.constant 6 : index
    %459 = memref.load %arg1[%458, %c6_180] : memref<24x8xi32, #tpu.memory_space<smem>>
    %460 = arith.index_cast %459 : i32 to index
    %c0_181 = arith.constant 0 : index
    %461 = vector.load %arg2[%460, %c0_181] : memref<32x128xf32, #tpu.memory_space<vmem>>, vector<1x128xf32>
    %462 = arith.maximumf %457, %461 : vector<1x128xf32>
    %463 = arith.index_cast %428 : i32 to index
    %c7_182 = arith.constant 7 : index
    %464 = memref.load %arg1[%463, %c7_182] : memref<24x8xi32, #tpu.memory_space<smem>>
    %465 = arith.index_cast %464 : i32 to index
    %c0_183 = arith.constant 0 : index
    %466 = vector.load %arg2[%465, %c0_183] : memref<32x128xf32, #tpu.memory_space<vmem>>, vector<1x128xf32>
    %467 = arith.maximumf %462, %466 : vector<1x128xf32>
    %468 = arith.index_cast %c3_i32 : i32 to index
    %c0_184 = arith.constant 0 : index
    %469 = vector.load %arg5[%468, %c0_184] : memref<8x128xf32, #tpu.memory_space<vmem>>, vector<1x128xf32>
    tpu.vector_store %arg5[%468, %c0_184], %467 {strides = array<i32>} : memref<8x128xf32, #tpu.memory_space<vmem>>, vector<1x128xf32>,
    %c16_i32_185 = arith.constant 16 : i32
    %470 = arith.addi %c16_i32_185, %0 : i32
    %471 = arith.addi %470, %c3_i32 : i32
    %472 = arith.index_cast %471 : i32 to index
    %c0_186 = arith.constant 0 : index
    %473 = memref.load %arg1[%472, %c0_186] : memref<24x8xi32, #tpu.memory_space<smem>>
    %474 = arith.index_cast %473 : i32 to index
    %c0_187 = arith.constant 0 : index
    %475 = vector.load %arg2[%474, %c0_187] : memref<32x128xf32, #tpu.memory_space<vmem>>, vector<1x128xf32>
    %476 = arith.index_cast %471 : i32 to index
    %c1_188 = arith.constant 1 : index
    %477 = memref.load %arg1[%476, %c1_188] : memref<24x8xi32, #tpu.memory_space<smem>>
    %478 = arith.index_cast %477 : i32 to index
    %c0_189 = arith.constant 0 : index
    %479 = vector.load %arg2[%478, %c0_189] : memref<32x128xf32, #tpu.memory_space<vmem>>, vector<1x128xf32>
    %480 = arith.maximumf %475, %479 : vector<1x128xf32>
    %481 = arith.index_cast %471 : i32 to index
    %c2_190 = arith.constant 2 : index
    %482 = memref.load %arg1[%481, %c2_190] : memref<24x8xi32, #tpu.memory_space<smem>>
    %483 = arith.index_cast %482 : i32 to index
    %c0_191 = arith.constant 0 : index
    %484 = vector.load %arg2[%483, %c0_191] : memref<32x128xf32, #tpu.memory_space<vmem>>, vector<1x128xf32>
    %485 = arith.maximumf %480, %484 : vector<1x128xf32>
    %486 = arith.index_cast %471 : i32 to index
    %c3_192 = arith.constant 3 : index
    %487 = memref.load %arg1[%486, %c3_192] : memref<24x8xi32, #tpu.memory_space<smem>>
    %488 = arith.index_cast %487 : i32 to index
    %c0_193 = arith.constant 0 : index
    %489 = vector.load %arg2[%488, %c0_193] : memref<32x128xf32, #tpu.memory_space<vmem>>, vector<1x128xf32>
    %490 = arith.maximumf %485, %489 : vector<1x128xf32>
    %491 = arith.index_cast %471 : i32 to index
    %c4_194 = arith.constant 4 : index
    %492 = memref.load %arg1[%491, %c4_194] : memref<24x8xi32, #tpu.memory_space<smem>>
    %493 = arith.index_cast %492 : i32 to index
    %c0_195 = arith.constant 0 : index
    %494 = vector.load %arg2[%493, %c0_195] : memref<32x128xf32, #tpu.memory_space<vmem>>, vector<1x128xf32>
    %495 = arith.maximumf %490, %494 : vector<1x128xf32>
    %496 = arith.index_cast %471 : i32 to index
    %c5_196 = arith.constant 5 : index
    %497 = memref.load %arg1[%496, %c5_196] : memref<24x8xi32, #tpu.memory_space<smem>>
    %498 = arith.index_cast %497 : i32 to index
    %c0_197 = arith.constant 0 : index
    %499 = vector.load %arg2[%498, %c0_197] : memref<32x128xf32, #tpu.memory_space<vmem>>, vector<1x128xf32>
    %500 = arith.maximumf %495, %499 : vector<1x128xf32>
    %501 = arith.index_cast %471 : i32 to index
    %c6_198 = arith.constant 6 : index
    %502 = memref.load %arg1[%501, %c6_198] : memref<24x8xi32, #tpu.memory_space<smem>>
    %503 = arith.index_cast %502 : i32 to index
    %c0_199 = arith.constant 0 : index
    %504 = vector.load %arg2[%503, %c0_199] : memref<32x128xf32, #tpu.memory_space<vmem>>, vector<1x128xf32>
    %505 = arith.maximumf %500, %504 : vector<1x128xf32>
    %506 = arith.index_cast %471 : i32 to index
    %c7_200 = arith.constant 7 : index
    %507 = memref.load %arg1[%506, %c7_200] : memref<24x8xi32, #tpu.memory_space<smem>>
    %508 = arith.index_cast %507 : i32 to index
    %c0_201 = arith.constant 0 : index
    %509 = vector.load %arg2[%508, %c0_201] : memref<32x128xf32, #tpu.memory_space<vmem>>, vector<1x128xf32>
    %510 = arith.maximumf %505, %509 : vector<1x128xf32>
    %511 = arith.index_cast %c3_i32 : i32 to index
    %c0_202 = arith.constant 0 : index
    %512 = vector.load %arg6[%511, %c0_202] : memref<8x128xf32, #tpu.memory_space<vmem>>, vector<1x128xf32>
    tpu.vector_store %arg6[%511, %c0_202], %510 {strides = array<i32>} : memref<8x128xf32, #tpu.memory_space<vmem>>, vector<1x128xf32>,
    %c4_i32 = arith.constant 4 : i32
    %513 = arith.addi %0, %c4_i32 : i32
    %514 = arith.index_cast %513 : i32 to index
    %c0_203 = arith.constant 0 : index
    %515 = memref.load %arg1[%514, %c0_203] : memref<24x8xi32, #tpu.memory_space<smem>>
    %516 = arith.index_cast %515 : i32 to index
    %c0_204 = arith.constant 0 : index
    %517 = vector.load %arg2[%516, %c0_204] : memref<32x128xf32, #tpu.memory_space<vmem>>, vector<1x128xf32>
    %518 = arith.index_cast %513 : i32 to index
    %c1_205 = arith.constant 1 : index
    %519 = memref.load %arg1[%518, %c1_205] : memref<24x8xi32, #tpu.memory_space<smem>>
    %520 = arith.index_cast %519 : i32 to index
    %c0_206 = arith.constant 0 : index
    %521 = vector.load %arg2[%520, %c0_206] : memref<32x128xf32, #tpu.memory_space<vmem>>, vector<1x128xf32>
    %522 = arith.maximumf %517, %521 : vector<1x128xf32>
    %523 = arith.index_cast %513 : i32 to index
    %c2_207 = arith.constant 2 : index
    %524 = memref.load %arg1[%523, %c2_207] : memref<24x8xi32, #tpu.memory_space<smem>>
    %525 = arith.index_cast %524 : i32 to index
    %c0_208 = arith.constant 0 : index
    %526 = vector.load %arg2[%525, %c0_208] : memref<32x128xf32, #tpu.memory_space<vmem>>, vector<1x128xf32>
    %527 = arith.maximumf %522, %526 : vector<1x128xf32>
    %528 = arith.index_cast %513 : i32 to index
    %c3_209 = arith.constant 3 : index
    %529 = memref.load %arg1[%528, %c3_209] : memref<24x8xi32, #tpu.memory_space<smem>>
    %530 = arith.index_cast %529 : i32 to index
    %c0_210 = arith.constant 0 : index
    %531 = vector.load %arg2[%530, %c0_210] : memref<32x128xf32, #tpu.memory_space<vmem>>, vector<1x128xf32>
    %532 = arith.maximumf %527, %531 : vector<1x128xf32>
    %533 = arith.index_cast %513 : i32 to index
    %c4_211 = arith.constant 4 : index
    %534 = memref.load %arg1[%533, %c4_211] : memref<24x8xi32, #tpu.memory_space<smem>>
    %535 = arith.index_cast %534 : i32 to index
    %c0_212 = arith.constant 0 : index
    %536 = vector.load %arg2[%535, %c0_212] : memref<32x128xf32, #tpu.memory_space<vmem>>, vector<1x128xf32>
    %537 = arith.maximumf %532, %536 : vector<1x128xf32>
    %538 = arith.index_cast %513 : i32 to index
    %c5_213 = arith.constant 5 : index
    %539 = memref.load %arg1[%538, %c5_213] : memref<24x8xi32, #tpu.memory_space<smem>>
    %540 = arith.index_cast %539 : i32 to index
    %c0_214 = arith.constant 0 : index
    %541 = vector.load %arg2[%540, %c0_214] : memref<32x128xf32, #tpu.memory_space<vmem>>, vector<1x128xf32>
    %542 = arith.maximumf %537, %541 : vector<1x128xf32>
    %543 = arith.index_cast %513 : i32 to index
    %c6_215 = arith.constant 6 : index
    %544 = memref.load %arg1[%543, %c6_215] : memref<24x8xi32, #tpu.memory_space<smem>>
    %545 = arith.index_cast %544 : i32 to index
    %c0_216 = arith.constant 0 : index
    %546 = vector.load %arg2[%545, %c0_216] : memref<32x128xf32, #tpu.memory_space<vmem>>, vector<1x128xf32>
    %547 = arith.maximumf %542, %546 : vector<1x128xf32>
    %548 = arith.index_cast %513 : i32 to index
    %c7_217 = arith.constant 7 : index
    %549 = memref.load %arg1[%548, %c7_217] : memref<24x8xi32, #tpu.memory_space<smem>>
    %550 = arith.index_cast %549 : i32 to index
    %c0_218 = arith.constant 0 : index
    %551 = vector.load %arg2[%550, %c0_218] : memref<32x128xf32, #tpu.memory_space<vmem>>, vector<1x128xf32>
    %552 = arith.maximumf %547, %551 : vector<1x128xf32>
    %553 = arith.index_cast %c4_i32 : i32 to index
    %c0_219 = arith.constant 0 : index
    %554 = vector.load %arg4[%553, %c0_219] : memref<8x128xf32, #tpu.memory_space<vmem>>, vector<1x128xf32>
    tpu.vector_store %arg4[%553, %c0_219], %552 {strides = array<i32>} : memref<8x128xf32, #tpu.memory_space<vmem>>, vector<1x128xf32>,
    %c8_i32_220 = arith.constant 8 : i32
    %555 = arith.addi %c8_i32_220, %0 : i32
    %556 = arith.addi %555, %c4_i32 : i32
    %557 = arith.index_cast %556 : i32 to index
    %c0_221 = arith.constant 0 : index
    %558 = memref.load %arg1[%557, %c0_221] : memref<24x8xi32, #tpu.memory_space<smem>>
    %559 = arith.index_cast %558 : i32 to index
    %c0_222 = arith.constant 0 : index
    %560 = vector.load %arg2[%559, %c0_222] : memref<32x128xf32, #tpu.memory_space<vmem>>, vector<1x128xf32>
    %561 = arith.index_cast %556 : i32 to index
    %c1_223 = arith.constant 1 : index
    %562 = memref.load %arg1[%561, %c1_223] : memref<24x8xi32, #tpu.memory_space<smem>>
    %563 = arith.index_cast %562 : i32 to index
    %c0_224 = arith.constant 0 : index
    %564 = vector.load %arg2[%563, %c0_224] : memref<32x128xf32, #tpu.memory_space<vmem>>, vector<1x128xf32>
    %565 = arith.maximumf %560, %564 : vector<1x128xf32>
    %566 = arith.index_cast %556 : i32 to index
    %c2_225 = arith.constant 2 : index
    %567 = memref.load %arg1[%566, %c2_225] : memref<24x8xi32, #tpu.memory_space<smem>>
    %568 = arith.index_cast %567 : i32 to index
    %c0_226 = arith.constant 0 : index
    %569 = vector.load %arg2[%568, %c0_226] : memref<32x128xf32, #tpu.memory_space<vmem>>, vector<1x128xf32>
    %570 = arith.maximumf %565, %569 : vector<1x128xf32>
    %571 = arith.index_cast %556 : i32 to index
    %c3_227 = arith.constant 3 : index
    %572 = memref.load %arg1[%571, %c3_227] : memref<24x8xi32, #tpu.memory_space<smem>>
    %573 = arith.index_cast %572 : i32 to index
    %c0_228 = arith.constant 0 : index
    %574 = vector.load %arg2[%573, %c0_228] : memref<32x128xf32, #tpu.memory_space<vmem>>, vector<1x128xf32>
    %575 = arith.maximumf %570, %574 : vector<1x128xf32>
    %576 = arith.index_cast %556 : i32 to index
    %c4_229 = arith.constant 4 : index
    %577 = memref.load %arg1[%576, %c4_229] : memref<24x8xi32, #tpu.memory_space<smem>>
    %578 = arith.index_cast %577 : i32 to index
    %c0_230 = arith.constant 0 : index
    %579 = vector.load %arg2[%578, %c0_230] : memref<32x128xf32, #tpu.memory_space<vmem>>, vector<1x128xf32>
    %580 = arith.maximumf %575, %579 : vector<1x128xf32>
    %581 = arith.index_cast %556 : i32 to index
    %c5_231 = arith.constant 5 : index
    %582 = memref.load %arg1[%581, %c5_231] : memref<24x8xi32, #tpu.memory_space<smem>>
    %583 = arith.index_cast %582 : i32 to index
    %c0_232 = arith.constant 0 : index
    %584 = vector.load %arg2[%583, %c0_232] : memref<32x128xf32, #tpu.memory_space<vmem>>, vector<1x128xf32>
    %585 = arith.maximumf %580, %584 : vector<1x128xf32>
    %586 = arith.index_cast %556 : i32 to index
    %c6_233 = arith.constant 6 : index
    %587 = memref.load %arg1[%586, %c6_233] : memref<24x8xi32, #tpu.memory_space<smem>>
    %588 = arith.index_cast %587 : i32 to index
    %c0_234 = arith.constant 0 : index
    %589 = vector.load %arg2[%588, %c0_234] : memref<32x128xf32, #tpu.memory_space<vmem>>, vector<1x128xf32>
    %590 = arith.maximumf %585, %589 : vector<1x128xf32>
    %591 = arith.index_cast %556 : i32 to index
    %c7_235 = arith.constant 7 : index
    %592 = memref.load %arg1[%591, %c7_235] : memref<24x8xi32, #tpu.memory_space<smem>>
    %593 = arith.index_cast %592 : i32 to index
    %c0_236 = arith.constant 0 : index
    %594 = vector.load %arg2[%593, %c0_236] : memref<32x128xf32, #tpu.memory_space<vmem>>, vector<1x128xf32>
    %595 = arith.maximumf %590, %594 : vector<1x128xf32>
    %596 = arith.index_cast %c4_i32 : i32 to index
    %c0_237 = arith.constant 0 : index
    %597 = vector.load %arg5[%596, %c0_237] : memref<8x128xf32, #tpu.memory_space<vmem>>, vector<1x128xf32>
    tpu.vector_store %arg5[%596, %c0_237], %595 {strides = array<i32>} : memref<8x128xf32, #tpu.memory_space<vmem>>, vector<1x128xf32>,
    %c16_i32_238 = arith.constant 16 : i32
    %598 = arith.addi %c16_i32_238, %0 : i32
    %599 = arith.addi %598, %c4_i32 : i32
    %600 = arith.index_cast %599 : i32 to index
    %c0_239 = arith.constant 0 : index
    %601 = memref.load %arg1[%600, %c0_239] : memref<24x8xi32, #tpu.memory_space<smem>>
    %602 = arith.index_cast %601 : i32 to index
    %c0_240 = arith.constant 0 : index
    %603 = vector.load %arg2[%602, %c0_240] : memref<32x128xf32, #tpu.memory_space<vmem>>, vector<1x128xf32>
    %604 = arith.index_cast %599 : i32 to index
    %c1_241 = arith.constant 1 : index
    %605 = memref.load %arg1[%604, %c1_241] : memref<24x8xi32, #tpu.memory_space<smem>>
    %606 = arith.index_cast %605 : i32 to index
    %c0_242 = arith.constant 0 : index
    %607 = vector.load %arg2[%606, %c0_242] : memref<32x128xf32, #tpu.memory_space<vmem>>, vector<1x128xf32>
    %608 = arith.maximumf %603, %607 : vector<1x128xf32>
    %609 = arith.index_cast %599 : i32 to index
    %c2_243 = arith.constant 2 : index
    %610 = memref.load %arg1[%609, %c2_243] : memref<24x8xi32, #tpu.memory_space<smem>>
    %611 = arith.index_cast %610 : i32 to index
    %c0_244 = arith.constant 0 : index
    %612 = vector.load %arg2[%611, %c0_244] : memref<32x128xf32, #tpu.memory_space<vmem>>, vector<1x128xf32>
    %613 = arith.maximumf %608, %612 : vector<1x128xf32>
    %614 = arith.index_cast %599 : i32 to index
    %c3_245 = arith.constant 3 : index
    %615 = memref.load %arg1[%614, %c3_245] : memref<24x8xi32, #tpu.memory_space<smem>>
    %616 = arith.index_cast %615 : i32 to index
    %c0_246 = arith.constant 0 : index
    %617 = vector.load %arg2[%616, %c0_246] : memref<32x128xf32, #tpu.memory_space<vmem>>, vector<1x128xf32>
    %618 = arith.maximumf %613, %617 : vector<1x128xf32>
    %619 = arith.index_cast %599 : i32 to index
    %c4_247 = arith.constant 4 : index
    %620 = memref.load %arg1[%619, %c4_247] : memref<24x8xi32, #tpu.memory_space<smem>>
    %621 = arith.index_cast %620 : i32 to index
    %c0_248 = arith.constant 0 : index
    %622 = vector.load %arg2[%621, %c0_248] : memref<32x128xf32, #tpu.memory_space<vmem>>, vector<1x128xf32>
    %623 = arith.maximumf %618, %622 : vector<1x128xf32>
    %624 = arith.index_cast %599 : i32 to index
    %c5_249 = arith.constant 5 : index
    %625 = memref.load %arg1[%624, %c5_249] : memref<24x8xi32, #tpu.memory_space<smem>>
    %626 = arith.index_cast %625 : i32 to index
    %c0_250 = arith.constant 0 : index
    %627 = vector.load %arg2[%626, %c0_250] : memref<32x128xf32, #tpu.memory_space<vmem>>, vector<1x128xf32>
    %628 = arith.maximumf %623, %627 : vector<1x128xf32>
    %629 = arith.index_cast %599 : i32 to index
    %c6_251 = arith.constant 6 : index
    %630 = memref.load %arg1[%629, %c6_251] : memref<24x8xi32, #tpu.memory_space<smem>>
    %631 = arith.index_cast %630 : i32 to index
    %c0_252 = arith.constant 0 : index
    %632 = vector.load %arg2[%631, %c0_252] : memref<32x128xf32, #tpu.memory_space<vmem>>, vector<1x128xf32>
    %633 = arith.maximumf %628, %632 : vector<1x128xf32>
    %634 = arith.index_cast %599 : i32 to index
    %c7_253 = arith.constant 7 : index
    %635 = memref.load %arg1[%634, %c7_253] : memref<24x8xi32, #tpu.memory_space<smem>>
    %636 = arith.index_cast %635 : i32 to index
    %c0_254 = arith.constant 0 : index
    %637 = vector.load %arg2[%636, %c0_254] : memref<32x128xf32, #tpu.memory_space<vmem>>, vector<1x128xf32>
    %638 = arith.maximumf %633, %637 : vector<1x128xf32>
    %639 = arith.index_cast %c4_i32 : i32 to index
    %c0_255 = arith.constant 0 : index
    %640 = vector.load %arg6[%639, %c0_255] : memref<8x128xf32, #tpu.memory_space<vmem>>, vector<1x128xf32>
    tpu.vector_store %arg6[%639, %c0_255], %638 {strides = array<i32>} : memref<8x128xf32, #tpu.memory_space<vmem>>, vector<1x128xf32>,
    %c5_i32 = arith.constant 5 : i32
    %641 = arith.addi %0, %c5_i32 : i32
    %642 = arith.index_cast %641 : i32 to index
    %c0_256 = arith.constant 0 : index
    %643 = memref.load %arg1[%642, %c0_256] : memref<24x8xi32, #tpu.memory_space<smem>>
    %644 = arith.index_cast %643 : i32 to index
    %c0_257 = arith.constant 0 : index
    %645 = vector.load %arg2[%644, %c0_257] : memref<32x128xf32, #tpu.memory_space<vmem>>, vector<1x128xf32>
    %646 = arith.index_cast %641 : i32 to index
    %c1_258 = arith.constant 1 : index
    %647 = memref.load %arg1[%646, %c1_258] : memref<24x8xi32, #tpu.memory_space<smem>>
    %648 = arith.index_cast %647 : i32 to index
    %c0_259 = arith.constant 0 : index
    %649 = vector.load %arg2[%648, %c0_259] : memref<32x128xf32, #tpu.memory_space<vmem>>, vector<1x128xf32>
    %650 = arith.maximumf %645, %649 : vector<1x128xf32>
    %651 = arith.index_cast %641 : i32 to index
    %c2_260 = arith.constant 2 : index
    %652 = memref.load %arg1[%651, %c2_260] : memref<24x8xi32, #tpu.memory_space<smem>>
    %653 = arith.index_cast %652 : i32 to index
    %c0_261 = arith.constant 0 : index
    %654 = vector.load %arg2[%653, %c0_261] : memref<32x128xf32, #tpu.memory_space<vmem>>, vector<1x128xf32>
    %655 = arith.maximumf %650, %654 : vector<1x128xf32>
    %656 = arith.index_cast %641 : i32 to index
    %c3_262 = arith.constant 3 : index
    %657 = memref.load %arg1[%656, %c3_262] : memref<24x8xi32, #tpu.memory_space<smem>>
    %658 = arith.index_cast %657 : i32 to index
    %c0_263 = arith.constant 0 : index
    %659 = vector.load %arg2[%658, %c0_263] : memref<32x128xf32, #tpu.memory_space<vmem>>, vector<1x128xf32>
    %660 = arith.maximumf %655, %659 : vector<1x128xf32>
    %661 = arith.index_cast %641 : i32 to index
    %c4_264 = arith.constant 4 : index
    %662 = memref.load %arg1[%661, %c4_264] : memref<24x8xi32, #tpu.memory_space<smem>>
    %663 = arith.index_cast %662 : i32 to index
    %c0_265 = arith.constant 0 : index
    %664 = vector.load %arg2[%663, %c0_265] : memref<32x128xf32, #tpu.memory_space<vmem>>, vector<1x128xf32>
    %665 = arith.maximumf %660, %664 : vector<1x128xf32>
    %666 = arith.index_cast %641 : i32 to index
    %c5_266 = arith.constant 5 : index
    %667 = memref.load %arg1[%666, %c5_266] : memref<24x8xi32, #tpu.memory_space<smem>>
    %668 = arith.index_cast %667 : i32 to index
    %c0_267 = arith.constant 0 : index
    %669 = vector.load %arg2[%668, %c0_267] : memref<32x128xf32, #tpu.memory_space<vmem>>, vector<1x128xf32>
    %670 = arith.maximumf %665, %669 : vector<1x128xf32>
    %671 = arith.index_cast %641 : i32 to index
    %c6_268 = arith.constant 6 : index
    %672 = memref.load %arg1[%671, %c6_268] : memref<24x8xi32, #tpu.memory_space<smem>>
    %673 = arith.index_cast %672 : i32 to index
    %c0_269 = arith.constant 0 : index
    %674 = vector.load %arg2[%673, %c0_269] : memref<32x128xf32, #tpu.memory_space<vmem>>, vector<1x128xf32>
    %675 = arith.maximumf %670, %674 : vector<1x128xf32>
    %676 = arith.index_cast %641 : i32 to index
    %c7_270 = arith.constant 7 : index
    %677 = memref.load %arg1[%676, %c7_270] : memref<24x8xi32, #tpu.memory_space<smem>>
    %678 = arith.index_cast %677 : i32 to index
    %c0_271 = arith.constant 0 : index
    %679 = vector.load %arg2[%678, %c0_271] : memref<32x128xf32, #tpu.memory_space<vmem>>, vector<1x128xf32>
    %680 = arith.maximumf %675, %679 : vector<1x128xf32>
    %681 = arith.index_cast %c5_i32 : i32 to index
    %c0_272 = arith.constant 0 : index
    %682 = vector.load %arg4[%681, %c0_272] : memref<8x128xf32, #tpu.memory_space<vmem>>, vector<1x128xf32>
    tpu.vector_store %arg4[%681, %c0_272], %680 {strides = array<i32>} : memref<8x128xf32, #tpu.memory_space<vmem>>, vector<1x128xf32>,
    %c8_i32_273 = arith.constant 8 : i32
    %683 = arith.addi %c8_i32_273, %0 : i32
    %684 = arith.addi %683, %c5_i32 : i32
    %685 = arith.index_cast %684 : i32 to index
    %c0_274 = arith.constant 0 : index
    %686 = memref.load %arg1[%685, %c0_274] : memref<24x8xi32, #tpu.memory_space<smem>>
    %687 = arith.index_cast %686 : i32 to index
    %c0_275 = arith.constant 0 : index
    %688 = vector.load %arg2[%687, %c0_275] : memref<32x128xf32, #tpu.memory_space<vmem>>, vector<1x128xf32>
    %689 = arith.index_cast %684 : i32 to index
    %c1_276 = arith.constant 1 : index
    %690 = memref.load %arg1[%689, %c1_276] : memref<24x8xi32, #tpu.memory_space<smem>>
    %691 = arith.index_cast %690 : i32 to index
    %c0_277 = arith.constant 0 : index
    %692 = vector.load %arg2[%691, %c0_277] : memref<32x128xf32, #tpu.memory_space<vmem>>, vector<1x128xf32>
    %693 = arith.maximumf %688, %692 : vector<1x128xf32>
    %694 = arith.index_cast %684 : i32 to index
    %c2_278 = arith.constant 2 : index
    %695 = memref.load %arg1[%694, %c2_278] : memref<24x8xi32, #tpu.memory_space<smem>>
    %696 = arith.index_cast %695 : i32 to index
    %c0_279 = arith.constant 0 : index
    %697 = vector.load %arg2[%696, %c0_279] : memref<32x128xf32, #tpu.memory_space<vmem>>, vector<1x128xf32>
    %698 = arith.maximumf %693, %697 : vector<1x128xf32>
    %699 = arith.index_cast %684 : i32 to index
    %c3_280 = arith.constant 3 : index
    %700 = memref.load %arg1[%699, %c3_280] : memref<24x8xi32, #tpu.memory_space<smem>>
    %701 = arith.index_cast %700 : i32 to index
    %c0_281 = arith.constant 0 : index
    %702 = vector.load %arg2[%701, %c0_281] : memref<32x128xf32, #tpu.memory_space<vmem>>, vector<1x128xf32>
    %703 = arith.maximumf %698, %702 : vector<1x128xf32>
    %704 = arith.index_cast %684 : i32 to index
    %c4_282 = arith.constant 4 : index
    %705 = memref.load %arg1[%704, %c4_282] : memref<24x8xi32, #tpu.memory_space<smem>>
    %706 = arith.index_cast %705 : i32 to index
    %c0_283 = arith.constant 0 : index
    %707 = vector.load %arg2[%706, %c0_283] : memref<32x128xf32, #tpu.memory_space<vmem>>, vector<1x128xf32>
    %708 = arith.maximumf %703, %707 : vector<1x128xf32>
    %709 = arith.index_cast %684 : i32 to index
    %c5_284 = arith.constant 5 : index
    %710 = memref.load %arg1[%709, %c5_284] : memref<24x8xi32, #tpu.memory_space<smem>>
    %711 = arith.index_cast %710 : i32 to index
    %c0_285 = arith.constant 0 : index
    %712 = vector.load %arg2[%711, %c0_285] : memref<32x128xf32, #tpu.memory_space<vmem>>, vector<1x128xf32>
    %713 = arith.maximumf %708, %712 : vector<1x128xf32>
    %714 = arith.index_cast %684 : i32 to index
    %c6_286 = arith.constant 6 : index
    %715 = memref.load %arg1[%714, %c6_286] : memref<24x8xi32, #tpu.memory_space<smem>>
    %716 = arith.index_cast %715 : i32 to index
    %c0_287 = arith.constant 0 : index
    %717 = vector.load %arg2[%716, %c0_287] : memref<32x128xf32, #tpu.memory_space<vmem>>, vector<1x128xf32>
    %718 = arith.maximumf %713, %717 : vector<1x128xf32>
    %719 = arith.index_cast %684 : i32 to index
    %c7_288 = arith.constant 7 : index
    %720 = memref.load %arg1[%719, %c7_288] : memref<24x8xi32, #tpu.memory_space<smem>>
    %721 = arith.index_cast %720 : i32 to index
    %c0_289 = arith.constant 0 : index
    %722 = vector.load %arg2[%721, %c0_289] : memref<32x128xf32, #tpu.memory_space<vmem>>, vector<1x128xf32>
    %723 = arith.maximumf %718, %722 : vector<1x128xf32>
    %724 = arith.index_cast %c5_i32 : i32 to index
    %c0_290 = arith.constant 0 : index
    %725 = vector.load %arg5[%724, %c0_290] : memref<8x128xf32, #tpu.memory_space<vmem>>, vector<1x128xf32>
    tpu.vector_store %arg5[%724, %c0_290], %723 {strides = array<i32>} : memref<8x128xf32, #tpu.memory_space<vmem>>, vector<1x128xf32>,
    %c16_i32_291 = arith.constant 16 : i32
    %726 = arith.addi %c16_i32_291, %0 : i32
    %727 = arith.addi %726, %c5_i32 : i32
    %728 = arith.index_cast %727 : i32 to index
    %c0_292 = arith.constant 0 : index
    %729 = memref.load %arg1[%728, %c0_292] : memref<24x8xi32, #tpu.memory_space<smem>>
    %730 = arith.index_cast %729 : i32 to index
    %c0_293 = arith.constant 0 : index
    %731 = vector.load %arg2[%730, %c0_293] : memref<32x128xf32, #tpu.memory_space<vmem>>, vector<1x128xf32>
    %732 = arith.index_cast %727 : i32 to index
    %c1_294 = arith.constant 1 : index
    %733 = memref.load %arg1[%732, %c1_294] : memref<24x8xi32, #tpu.memory_space<smem>>
    %734 = arith.index_cast %733 : i32 to index
    %c0_295 = arith.constant 0 : index
    %735 = vector.load %arg2[%734, %c0_295] : memref<32x128xf32, #tpu.memory_space<vmem>>, vector<1x128xf32>
    %736 = arith.maximumf %731, %735 : vector<1x128xf32>
    %737 = arith.index_cast %727 : i32 to index
    %c2_296 = arith.constant 2 : index
    %738 = memref.load %arg1[%737, %c2_296] : memref<24x8xi32, #tpu.memory_space<smem>>
    %739 = arith.index_cast %738 : i32 to index
    %c0_297 = arith.constant 0 : index
    %740 = vector.load %arg2[%739, %c0_297] : memref<32x128xf32, #tpu.memory_space<vmem>>, vector<1x128xf32>
    %741 = arith.maximumf %736, %740 : vector<1x128xf32>
    %742 = arith.index_cast %727 : i32 to index
    %c3_298 = arith.constant 3 : index
    %743 = memref.load %arg1[%742, %c3_298] : memref<24x8xi32, #tpu.memory_space<smem>>
    %744 = arith.index_cast %743 : i32 to index
    %c0_299 = arith.constant 0 : index
    %745 = vector.load %arg2[%744, %c0_299] : memref<32x128xf32, #tpu.memory_space<vmem>>, vector<1x128xf32>
    %746 = arith.maximumf %741, %745 : vector<1x128xf32>
    %747 = arith.index_cast %727 : i32 to index
    %c4_300 = arith.constant 4 : index
    %748 = memref.load %arg1[%747, %c4_300] : memref<24x8xi32, #tpu.memory_space<smem>>
    %749 = arith.index_cast %748 : i32 to index
    %c0_301 = arith.constant 0 : index
    %750 = vector.load %arg2[%749, %c0_301] : memref<32x128xf32, #tpu.memory_space<vmem>>, vector<1x128xf32>
    %751 = arith.maximumf %746, %750 : vector<1x128xf32>
    %752 = arith.index_cast %727 : i32 to index
    %c5_302 = arith.constant 5 : index
    %753 = memref.load %arg1[%752, %c5_302] : memref<24x8xi32, #tpu.memory_space<smem>>
    %754 = arith.index_cast %753 : i32 to index
    %c0_303 = arith.constant 0 : index
    %755 = vector.load %arg2[%754, %c0_303] : memref<32x128xf32, #tpu.memory_space<vmem>>, vector<1x128xf32>
    %756 = arith.maximumf %751, %755 : vector<1x128xf32>
    %757 = arith.index_cast %727 : i32 to index
    %c6_304 = arith.constant 6 : index
    %758 = memref.load %arg1[%757, %c6_304] : memref<24x8xi32, #tpu.memory_space<smem>>
    %759 = arith.index_cast %758 : i32 to index
    %c0_305 = arith.constant 0 : index
    %760 = vector.load %arg2[%759, %c0_305] : memref<32x128xf32, #tpu.memory_space<vmem>>, vector<1x128xf32>
    %761 = arith.maximumf %756, %760 : vector<1x128xf32>
    %762 = arith.index_cast %727 : i32 to index
    %c7_306 = arith.constant 7 : index
    %763 = memref.load %arg1[%762, %c7_306] : memref<24x8xi32, #tpu.memory_space<smem>>
    %764 = arith.index_cast %763 : i32 to index
    %c0_307 = arith.constant 0 : index
    %765 = vector.load %arg2[%764, %c0_307] : memref<32x128xf32, #tpu.memory_space<vmem>>, vector<1x128xf32>
    %766 = arith.maximumf %761, %765 : vector<1x128xf32>
    %767 = arith.index_cast %c5_i32 : i32 to index
    %c0_308 = arith.constant 0 : index
    %768 = vector.load %arg6[%767, %c0_308] : memref<8x128xf32, #tpu.memory_space<vmem>>, vector<1x128xf32>
    tpu.vector_store %arg6[%767, %c0_308], %766 {strides = array<i32>} : memref<8x128xf32, #tpu.memory_space<vmem>>, vector<1x128xf32>,
    %c6_i32 = arith.constant 6 : i32
    %769 = arith.addi %0, %c6_i32 : i32
    %770 = arith.index_cast %769 : i32 to index
    %c0_309 = arith.constant 0 : index
    %771 = memref.load %arg1[%770, %c0_309] : memref<24x8xi32, #tpu.memory_space<smem>>
    %772 = arith.index_cast %771 : i32 to index
    %c0_310 = arith.constant 0 : index
    %773 = vector.load %arg2[%772, %c0_310] : memref<32x128xf32, #tpu.memory_space<vmem>>, vector<1x128xf32>
    %774 = arith.index_cast %769 : i32 to index
    %c1_311 = arith.constant 1 : index
    %775 = memref.load %arg1[%774, %c1_311] : memref<24x8xi32, #tpu.memory_space<smem>>
    %776 = arith.index_cast %775 : i32 to index
    %c0_312 = arith.constant 0 : index
    %777 = vector.load %arg2[%776, %c0_312] : memref<32x128xf32, #tpu.memory_space<vmem>>, vector<1x128xf32>
    %778 = arith.maximumf %773, %777 : vector<1x128xf32>
    %779 = arith.index_cast %769 : i32 to index
    %c2_313 = arith.constant 2 : index
    %780 = memref.load %arg1[%779, %c2_313] : memref<24x8xi32, #tpu.memory_space<smem>>
    %781 = arith.index_cast %780 : i32 to index
    %c0_314 = arith.constant 0 : index
    %782 = vector.load %arg2[%781, %c0_314] : memref<32x128xf32, #tpu.memory_space<vmem>>, vector<1x128xf32>
    %783 = arith.maximumf %778, %782 : vector<1x128xf32>
    %784 = arith.index_cast %769 : i32 to index
    %c3_315 = arith.constant 3 : index
    %785 = memref.load %arg1[%784, %c3_315] : memref<24x8xi32, #tpu.memory_space<smem>>
    %786 = arith.index_cast %785 : i32 to index
    %c0_316 = arith.constant 0 : index
    %787 = vector.load %arg2[%786, %c0_316] : memref<32x128xf32, #tpu.memory_space<vmem>>, vector<1x128xf32>
    %788 = arith.maximumf %783, %787 : vector<1x128xf32>
    %789 = arith.index_cast %769 : i32 to index
    %c4_317 = arith.constant 4 : index
    %790 = memref.load %arg1[%789, %c4_317] : memref<24x8xi32, #tpu.memory_space<smem>>
    %791 = arith.index_cast %790 : i32 to index
    %c0_318 = arith.constant 0 : index
    %792 = vector.load %arg2[%791, %c0_318] : memref<32x128xf32, #tpu.memory_space<vmem>>, vector<1x128xf32>
    %793 = arith.maximumf %788, %792 : vector<1x128xf32>
    %794 = arith.index_cast %769 : i32 to index
    %c5_319 = arith.constant 5 : index
    %795 = memref.load %arg1[%794, %c5_319] : memref<24x8xi32, #tpu.memory_space<smem>>
    %796 = arith.index_cast %795 : i32 to index
    %c0_320 = arith.constant 0 : index
    %797 = vector.load %arg2[%796, %c0_320] : memref<32x128xf32, #tpu.memory_space<vmem>>, vector<1x128xf32>
    %798 = arith.maximumf %793, %797 : vector<1x128xf32>
    %799 = arith.index_cast %769 : i32 to index
    %c6_321 = arith.constant 6 : index
    %800 = memref.load %arg1[%799, %c6_321] : memref<24x8xi32, #tpu.memory_space<smem>>
    %801 = arith.index_cast %800 : i32 to index
    %c0_322 = arith.constant 0 : index
    %802 = vector.load %arg2[%801, %c0_322] : memref<32x128xf32, #tpu.memory_space<vmem>>, vector<1x128xf32>
    %803 = arith.maximumf %798, %802 : vector<1x128xf32>
    %804 = arith.index_cast %769 : i32 to index
    %c7_323 = arith.constant 7 : index
    %805 = memref.load %arg1[%804, %c7_323] : memref<24x8xi32, #tpu.memory_space<smem>>
    %806 = arith.index_cast %805 : i32 to index
    %c0_324 = arith.constant 0 : index
    %807 = vector.load %arg2[%806, %c0_324] : memref<32x128xf32, #tpu.memory_space<vmem>>, vector<1x128xf32>
    %808 = arith.maximumf %803, %807 : vector<1x128xf32>
    %809 = arith.index_cast %c6_i32 : i32 to index
    %c0_325 = arith.constant 0 : index
    %810 = vector.load %arg4[%809, %c0_325] : memref<8x128xf32, #tpu.memory_space<vmem>>, vector<1x128xf32>
    tpu.vector_store %arg4[%809, %c0_325], %808 {strides = array<i32>} : memref<8x128xf32, #tpu.memory_space<vmem>>, vector<1x128xf32>,
    %c8_i32_326 = arith.constant 8 : i32
    %811 = arith.addi %c8_i32_326, %0 : i32
    %812 = arith.addi %811, %c6_i32 : i32
    %813 = arith.index_cast %812 : i32 to index
    %c0_327 = arith.constant 0 : index
    %814 = memref.load %arg1[%813, %c0_327] : memref<24x8xi32, #tpu.memory_space<smem>>
    %815 = arith.index_cast %814 : i32 to index
    %c0_328 = arith.constant 0 : index
    %816 = vector.load %arg2[%815, %c0_328] : memref<32x128xf32, #tpu.memory_space<vmem>>, vector<1x128xf32>
    %817 = arith.index_cast %812 : i32 to index
    %c1_329 = arith.constant 1 : index
    %818 = memref.load %arg1[%817, %c1_329] : memref<24x8xi32, #tpu.memory_space<smem>>
    %819 = arith.index_cast %818 : i32 to index
    %c0_330 = arith.constant 0 : index
    %820 = vector.load %arg2[%819, %c0_330] : memref<32x128xf32, #tpu.memory_space<vmem>>, vector<1x128xf32>
    %821 = arith.maximumf %816, %820 : vector<1x128xf32>
    %822 = arith.index_cast %812 : i32 to index
    %c2_331 = arith.constant 2 : index
    %823 = memref.load %arg1[%822, %c2_331] : memref<24x8xi32, #tpu.memory_space<smem>>
    %824 = arith.index_cast %823 : i32 to index
    %c0_332 = arith.constant 0 : index
    %825 = vector.load %arg2[%824, %c0_332] : memref<32x128xf32, #tpu.memory_space<vmem>>, vector<1x128xf32>
    %826 = arith.maximumf %821, %825 : vector<1x128xf32>
    %827 = arith.index_cast %812 : i32 to index
    %c3_333 = arith.constant 3 : index
    %828 = memref.load %arg1[%827, %c3_333] : memref<24x8xi32, #tpu.memory_space<smem>>
    %829 = arith.index_cast %828 : i32 to index
    %c0_334 = arith.constant 0 : index
    %830 = vector.load %arg2[%829, %c0_334] : memref<32x128xf32, #tpu.memory_space<vmem>>, vector<1x128xf32>
    %831 = arith.maximumf %826, %830 : vector<1x128xf32>
    %832 = arith.index_cast %812 : i32 to index
    %c4_335 = arith.constant 4 : index
    %833 = memref.load %arg1[%832, %c4_335] : memref<24x8xi32, #tpu.memory_space<smem>>
    %834 = arith.index_cast %833 : i32 to index
    %c0_336 = arith.constant 0 : index
    %835 = vector.load %arg2[%834, %c0_336] : memref<32x128xf32, #tpu.memory_space<vmem>>, vector<1x128xf32>
    %836 = arith.maximumf %831, %835 : vector<1x128xf32>
    %837 = arith.index_cast %812 : i32 to index
    %c5_337 = arith.constant 5 : index
    %838 = memref.load %arg1[%837, %c5_337] : memref<24x8xi32, #tpu.memory_space<smem>>
    %839 = arith.index_cast %838 : i32 to index
    %c0_338 = arith.constant 0 : index
    %840 = vector.load %arg2[%839, %c0_338] : memref<32x128xf32, #tpu.memory_space<vmem>>, vector<1x128xf32>
    %841 = arith.maximumf %836, %840 : vector<1x128xf32>
    %842 = arith.index_cast %812 : i32 to index
    %c6_339 = arith.constant 6 : index
    %843 = memref.load %arg1[%842, %c6_339] : memref<24x8xi32, #tpu.memory_space<smem>>
    %844 = arith.index_cast %843 : i32 to index
    %c0_340 = arith.constant 0 : index
    %845 = vector.load %arg2[%844, %c0_340] : memref<32x128xf32, #tpu.memory_space<vmem>>, vector<1x128xf32>
    %846 = arith.maximumf %841, %845 : vector<1x128xf32>
    %847 = arith.index_cast %812 : i32 to index
    %c7_341 = arith.constant 7 : index
    %848 = memref.load %arg1[%847, %c7_341] : memref<24x8xi32, #tpu.memory_space<smem>>
    %849 = arith.index_cast %848 : i32 to index
    %c0_342 = arith.constant 0 : index
    %850 = vector.load %arg2[%849, %c0_342] : memref<32x128xf32, #tpu.memory_space<vmem>>, vector<1x128xf32>
    %851 = arith.maximumf %846, %850 : vector<1x128xf32>
    %852 = arith.index_cast %c6_i32 : i32 to index
    %c0_343 = arith.constant 0 : index
    %853 = vector.load %arg5[%852, %c0_343] : memref<8x128xf32, #tpu.memory_space<vmem>>, vector<1x128xf32>
    tpu.vector_store %arg5[%852, %c0_343], %851 {strides = array<i32>} : memref<8x128xf32, #tpu.memory_space<vmem>>, vector<1x128xf32>,
    %c16_i32_344 = arith.constant 16 : i32
    %854 = arith.addi %c16_i32_344, %0 : i32
    %855 = arith.addi %854, %c6_i32 : i32
    %856 = arith.index_cast %855 : i32 to index
    %c0_345 = arith.constant 0 : index
    %857 = memref.load %arg1[%856, %c0_345] : memref<24x8xi32, #tpu.memory_space<smem>>
    %858 = arith.index_cast %857 : i32 to index
    %c0_346 = arith.constant 0 : index
    %859 = vector.load %arg2[%858, %c0_346] : memref<32x128xf32, #tpu.memory_space<vmem>>, vector<1x128xf32>
    %860 = arith.index_cast %855 : i32 to index
    %c1_347 = arith.constant 1 : index
    %861 = memref.load %arg1[%860, %c1_347] : memref<24x8xi32, #tpu.memory_space<smem>>
    %862 = arith.index_cast %861 : i32 to index
    %c0_348 = arith.constant 0 : index
    %863 = vector.load %arg2[%862, %c0_348] : memref<32x128xf32, #tpu.memory_space<vmem>>, vector<1x128xf32>
    %864 = arith.maximumf %859, %863 : vector<1x128xf32>
    %865 = arith.index_cast %855 : i32 to index
    %c2_349 = arith.constant 2 : index
    %866 = memref.load %arg1[%865, %c2_349] : memref<24x8xi32, #tpu.memory_space<smem>>
    %867 = arith.index_cast %866 : i32 to index
    %c0_350 = arith.constant 0 : index
    %868 = vector.load %arg2[%867, %c0_350] : memref<32x128xf32, #tpu.memory_space<vmem>>, vector<1x128xf32>
    %869 = arith.maximumf %864, %868 : vector<1x128xf32>
    %870 = arith.index_cast %855 : i32 to index
    %c3_351 = arith.constant 3 : index
    %871 = memref.load %arg1[%870, %c3_351] : memref<24x8xi32, #tpu.memory_space<smem>>
    %872 = arith.index_cast %871 : i32 to index
    %c0_352 = arith.constant 0 : index
    %873 = vector.load %arg2[%872, %c0_352] : memref<32x128xf32, #tpu.memory_space<vmem>>, vector<1x128xf32>
    %874 = arith.maximumf %869, %873 : vector<1x128xf32>
    %875 = arith.index_cast %855 : i32 to index
    %c4_353 = arith.constant 4 : index
    %876 = memref.load %arg1[%875, %c4_353] : memref<24x8xi32, #tpu.memory_space<smem>>
    %877 = arith.index_cast %876 : i32 to index
    %c0_354 = arith.constant 0 : index
    %878 = vector.load %arg2[%877, %c0_354] : memref<32x128xf32, #tpu.memory_space<vmem>>, vector<1x128xf32>
    %879 = arith.maximumf %874, %878 : vector<1x128xf32>
    %880 = arith.index_cast %855 : i32 to index
    %c5_355 = arith.constant 5 : index
    %881 = memref.load %arg1[%880, %c5_355] : memref<24x8xi32, #tpu.memory_space<smem>>
    %882 = arith.index_cast %881 : i32 to index
    %c0_356 = arith.constant 0 : index
    %883 = vector.load %arg2[%882, %c0_356] : memref<32x128xf32, #tpu.memory_space<vmem>>, vector<1x128xf32>
    %884 = arith.maximumf %879, %883 : vector<1x128xf32>
    %885 = arith.index_cast %855 : i32 to index
    %c6_357 = arith.constant 6 : index
    %886 = memref.load %arg1[%885, %c6_357] : memref<24x8xi32, #tpu.memory_space<smem>>
    %887 = arith.index_cast %886 : i32 to index
    %c0_358 = arith.constant 0 : index
    %888 = vector.load %arg2[%887, %c0_358] : memref<32x128xf32, #tpu.memory_space<vmem>>, vector<1x128xf32>
    %889 = arith.maximumf %884, %888 : vector<1x128xf32>
    %890 = arith.index_cast %855 : i32 to index
    %c7_359 = arith.constant 7 : index
    %891 = memref.load %arg1[%890, %c7_359] : memref<24x8xi32, #tpu.memory_space<smem>>
    %892 = arith.index_cast %891 : i32 to index
    %c0_360 = arith.constant 0 : index
    %893 = vector.load %arg2[%892, %c0_360] : memref<32x128xf32, #tpu.memory_space<vmem>>, vector<1x128xf32>
    %894 = arith.maximumf %889, %893 : vector<1x128xf32>
    %895 = arith.index_cast %c6_i32 : i32 to index
    %c0_361 = arith.constant 0 : index
    %896 = vector.load %arg6[%895, %c0_361] : memref<8x128xf32, #tpu.memory_space<vmem>>, vector<1x128xf32>
    tpu.vector_store %arg6[%895, %c0_361], %894 {strides = array<i32>} : memref<8x128xf32, #tpu.memory_space<vmem>>, vector<1x128xf32>,
    %c7_i32 = arith.constant 7 : i32
    %897 = arith.addi %0, %c7_i32 : i32
    %898 = arith.index_cast %897 : i32 to index
    %c0_362 = arith.constant 0 : index
    %899 = memref.load %arg1[%898, %c0_362] : memref<24x8xi32, #tpu.memory_space<smem>>
    %900 = arith.index_cast %899 : i32 to index
    %c0_363 = arith.constant 0 : index
    %901 = vector.load %arg2[%900, %c0_363] : memref<32x128xf32, #tpu.memory_space<vmem>>, vector<1x128xf32>
    %902 = arith.index_cast %897 : i32 to index
    %c1_364 = arith.constant 1 : index
    %903 = memref.load %arg1[%902, %c1_364] : memref<24x8xi32, #tpu.memory_space<smem>>
    %904 = arith.index_cast %903 : i32 to index
    %c0_365 = arith.constant 0 : index
    %905 = vector.load %arg2[%904, %c0_365] : memref<32x128xf32, #tpu.memory_space<vmem>>, vector<1x128xf32>
    %906 = arith.maximumf %901, %905 : vector<1x128xf32>
    %907 = arith.index_cast %897 : i32 to index
    %c2_366 = arith.constant 2 : index
    %908 = memref.load %arg1[%907, %c2_366] : memref<24x8xi32, #tpu.memory_space<smem>>
    %909 = arith.index_cast %908 : i32 to index
    %c0_367 = arith.constant 0 : index
    %910 = vector.load %arg2[%909, %c0_367] : memref<32x128xf32, #tpu.memory_space<vmem>>, vector<1x128xf32>
    %911 = arith.maximumf %906, %910 : vector<1x128xf32>
    %912 = arith.index_cast %897 : i32 to index
    %c3_368 = arith.constant 3 : index
    %913 = memref.load %arg1[%912, %c3_368] : memref<24x8xi32, #tpu.memory_space<smem>>
    %914 = arith.index_cast %913 : i32 to index
    %c0_369 = arith.constant 0 : index
    %915 = vector.load %arg2[%914, %c0_369] : memref<32x128xf32, #tpu.memory_space<vmem>>, vector<1x128xf32>
    %916 = arith.maximumf %911, %915 : vector<1x128xf32>
    %917 = arith.index_cast %897 : i32 to index
    %c4_370 = arith.constant 4 : index
    %918 = memref.load %arg1[%917, %c4_370] : memref<24x8xi32, #tpu.memory_space<smem>>
    %919 = arith.index_cast %918 : i32 to index
    %c0_371 = arith.constant 0 : index
    %920 = vector.load %arg2[%919, %c0_371] : memref<32x128xf32, #tpu.memory_space<vmem>>, vector<1x128xf32>
    %921 = arith.maximumf %916, %920 : vector<1x128xf32>
    %922 = arith.index_cast %897 : i32 to index
    %c5_372 = arith.constant 5 : index
    %923 = memref.load %arg1[%922, %c5_372] : memref<24x8xi32, #tpu.memory_space<smem>>
    %924 = arith.index_cast %923 : i32 to index
    %c0_373 = arith.constant 0 : index
    %925 = vector.load %arg2[%924, %c0_373] : memref<32x128xf32, #tpu.memory_space<vmem>>, vector<1x128xf32>
    %926 = arith.maximumf %921, %925 : vector<1x128xf32>
    %927 = arith.index_cast %897 : i32 to index
    %c6_374 = arith.constant 6 : index
    %928 = memref.load %arg1[%927, %c6_374] : memref<24x8xi32, #tpu.memory_space<smem>>
    %929 = arith.index_cast %928 : i32 to index
    %c0_375 = arith.constant 0 : index
    %930 = vector.load %arg2[%929, %c0_375] : memref<32x128xf32, #tpu.memory_space<vmem>>, vector<1x128xf32>
    %931 = arith.maximumf %926, %930 : vector<1x128xf32>
    %932 = arith.index_cast %897 : i32 to index
    %c7_376 = arith.constant 7 : index
    %933 = memref.load %arg1[%932, %c7_376] : memref<24x8xi32, #tpu.memory_space<smem>>
    %934 = arith.index_cast %933 : i32 to index
    %c0_377 = arith.constant 0 : index
    %935 = vector.load %arg2[%934, %c0_377] : memref<32x128xf32, #tpu.memory_space<vmem>>, vector<1x128xf32>
    %936 = arith.maximumf %931, %935 : vector<1x128xf32>
    %937 = arith.index_cast %c7_i32 : i32 to index
    %c0_378 = arith.constant 0 : index
    %938 = vector.load %arg4[%937, %c0_378] : memref<8x128xf32, #tpu.memory_space<vmem>>, vector<1x128xf32>
    tpu.vector_store %arg4[%937, %c0_378], %936 {strides = array<i32>} : memref<8x128xf32, #tpu.memory_space<vmem>>, vector<1x128xf32>,
    %c8_i32_379 = arith.constant 8 : i32
    %939 = arith.addi %c8_i32_379, %0 : i32
    %940 = arith.addi %939, %c7_i32 : i32
    %941 = arith.index_cast %940 : i32 to index
    %c0_380 = arith.constant 0 : index
    %942 = memref.load %arg1[%941, %c0_380] : memref<24x8xi32, #tpu.memory_space<smem>>
    %943 = arith.index_cast %942 : i32 to index
    %c0_381 = arith.constant 0 : index
    %944 = vector.load %arg2[%943, %c0_381] : memref<32x128xf32, #tpu.memory_space<vmem>>, vector<1x128xf32>
    %945 = arith.index_cast %940 : i32 to index
    %c1_382 = arith.constant 1 : index
    %946 = memref.load %arg1[%945, %c1_382] : memref<24x8xi32, #tpu.memory_space<smem>>
    %947 = arith.index_cast %946 : i32 to index
    %c0_383 = arith.constant 0 : index
    %948 = vector.load %arg2[%947, %c0_383] : memref<32x128xf32, #tpu.memory_space<vmem>>, vector<1x128xf32>
    %949 = arith.maximumf %944, %948 : vector<1x128xf32>
    %950 = arith.index_cast %940 : i32 to index
    %c2_384 = arith.constant 2 : index
    %951 = memref.load %arg1[%950, %c2_384] : memref<24x8xi32, #tpu.memory_space<smem>>
    %952 = arith.index_cast %951 : i32 to index
    %c0_385 = arith.constant 0 : index
    %953 = vector.load %arg2[%952, %c0_385] : memref<32x128xf32, #tpu.memory_space<vmem>>, vector<1x128xf32>
    %954 = arith.maximumf %949, %953 : vector<1x128xf32>
    %955 = arith.index_cast %940 : i32 to index
    %c3_386 = arith.constant 3 : index
    %956 = memref.load %arg1[%955, %c3_386] : memref<24x8xi32, #tpu.memory_space<smem>>
    %957 = arith.index_cast %956 : i32 to index
    %c0_387 = arith.constant 0 : index
    %958 = vector.load %arg2[%957, %c0_387] : memref<32x128xf32, #tpu.memory_space<vmem>>, vector<1x128xf32>
    %959 = arith.maximumf %954, %958 : vector<1x128xf32>
    %960 = arith.index_cast %940 : i32 to index
    %c4_388 = arith.constant 4 : index
    %961 = memref.load %arg1[%960, %c4_388] : memref<24x8xi32, #tpu.memory_space<smem>>
    %962 = arith.index_cast %961 : i32 to index
    %c0_389 = arith.constant 0 : index
    %963 = vector.load %arg2[%962, %c0_389] : memref<32x128xf32, #tpu.memory_space<vmem>>, vector<1x128xf32>
    %964 = arith.maximumf %959, %963 : vector<1x128xf32>
    %965 = arith.index_cast %940 : i32 to index
    %c5_390 = arith.constant 5 : index
    %966 = memref.load %arg1[%965, %c5_390] : memref<24x8xi32, #tpu.memory_space<smem>>
    %967 = arith.index_cast %966 : i32 to index
    %c0_391 = arith.constant 0 : index
    %968 = vector.load %arg2[%967, %c0_391] : memref<32x128xf32, #tpu.memory_space<vmem>>, vector<1x128xf32>
    %969 = arith.maximumf %964, %968 : vector<1x128xf32>
    %970 = arith.index_cast %940 : i32 to index
    %c6_392 = arith.constant 6 : index
    %971 = memref.load %arg1[%970, %c6_392] : memref<24x8xi32, #tpu.memory_space<smem>>
    %972 = arith.index_cast %971 : i32 to index
    %c0_393 = arith.constant 0 : index
    %973 = vector.load %arg2[%972, %c0_393] : memref<32x128xf32, #tpu.memory_space<vmem>>, vector<1x128xf32>
    %974 = arith.maximumf %969, %973 : vector<1x128xf32>
    %975 = arith.index_cast %940 : i32 to index
    %c7_394 = arith.constant 7 : index
    %976 = memref.load %arg1[%975, %c7_394] : memref<24x8xi32, #tpu.memory_space<smem>>
    %977 = arith.index_cast %976 : i32 to index
    %c0_395 = arith.constant 0 : index
    %978 = vector.load %arg2[%977, %c0_395] : memref<32x128xf32, #tpu.memory_space<vmem>>, vector<1x128xf32>
    %979 = arith.maximumf %974, %978 : vector<1x128xf32>
    %980 = arith.index_cast %c7_i32 : i32 to index
    %c0_396 = arith.constant 0 : index
    %981 = vector.load %arg5[%980, %c0_396] : memref<8x128xf32, #tpu.memory_space<vmem>>, vector<1x128xf32>
    tpu.vector_store %arg5[%980, %c0_396], %979 {strides = array<i32>} : memref<8x128xf32, #tpu.memory_space<vmem>>, vector<1x128xf32>,
    %c16_i32_397 = arith.constant 16 : i32
    %982 = arith.addi %c16_i32_397, %0 : i32
    %983 = arith.addi %982, %c7_i32 : i32
    %984 = arith.index_cast %983 : i32 to index
    %c0_398 = arith.constant 0 : index
    %985 = memref.load %arg1[%984, %c0_398] : memref<24x8xi32, #tpu.memory_space<smem>>
    %986 = arith.index_cast %985 : i32 to index
    %c0_399 = arith.constant 0 : index
    %987 = vector.load %arg2[%986, %c0_399] : memref<32x128xf32, #tpu.memory_space<vmem>>, vector<1x128xf32>
    %988 = arith.index_cast %983 : i32 to index
    %c1_400 = arith.constant 1 : index
    %989 = memref.load %arg1[%988, %c1_400] : memref<24x8xi32, #tpu.memory_space<smem>>
    %990 = arith.index_cast %989 : i32 to index
    %c0_401 = arith.constant 0 : index
    %991 = vector.load %arg2[%990, %c0_401] : memref<32x128xf32, #tpu.memory_space<vmem>>, vector<1x128xf32>
    %992 = arith.maximumf %987, %991 : vector<1x128xf32>
    %993 = arith.index_cast %983 : i32 to index
    %c2_402 = arith.constant 2 : index
    %994 = memref.load %arg1[%993, %c2_402] : memref<24x8xi32, #tpu.memory_space<smem>>
    %995 = arith.index_cast %994 : i32 to index
    %c0_403 = arith.constant 0 : index
    %996 = vector.load %arg2[%995, %c0_403] : memref<32x128xf32, #tpu.memory_space<vmem>>, vector<1x128xf32>
    %997 = arith.maximumf %992, %996 : vector<1x128xf32>
    %998 = arith.index_cast %983 : i32 to index
    %c3_404 = arith.constant 3 : index
    %999 = memref.load %arg1[%998, %c3_404] : memref<24x8xi32, #tpu.memory_space<smem>>
    %1000 = arith.index_cast %999 : i32 to index
    %c0_405 = arith.constant 0 : index
    %1001 = vector.load %arg2[%1000, %c0_405] : memref<32x128xf32, #tpu.memory_space<vmem>>, vector<1x128xf32>
    %1002 = arith.maximumf %997, %1001 : vector<1x128xf32>
    %1003 = arith.index_cast %983 : i32 to index
    %c4_406 = arith.constant 4 : index
    %1004 = memref.load %arg1[%1003, %c4_406] : memref<24x8xi32, #tpu.memory_space<smem>>
    %1005 = arith.index_cast %1004 : i32 to index
    %c0_407 = arith.constant 0 : index
    %1006 = vector.load %arg2[%1005, %c0_407] : memref<32x128xf32, #tpu.memory_space<vmem>>, vector<1x128xf32>
    %1007 = arith.maximumf %1002, %1006 : vector<1x128xf32>
    %1008 = arith.index_cast %983 : i32 to index
    %c5_408 = arith.constant 5 : index
    %1009 = memref.load %arg1[%1008, %c5_408] : memref<24x8xi32, #tpu.memory_space<smem>>
    %1010 = arith.index_cast %1009 : i32 to index
    %c0_409 = arith.constant 0 : index
    %1011 = vector.load %arg2[%1010, %c0_409] : memref<32x128xf32, #tpu.memory_space<vmem>>, vector<1x128xf32>
    %1012 = arith.maximumf %1007, %1011 : vector<1x128xf32>
    %1013 = arith.index_cast %983 : i32 to index
    %c6_410 = arith.constant 6 : index
    %1014 = memref.load %arg1[%1013, %c6_410] : memref<24x8xi32, #tpu.memory_space<smem>>
    %1015 = arith.index_cast %1014 : i32 to index
    %c0_411 = arith.constant 0 : index
    %1016 = vector.load %arg2[%1015, %c0_411] : memref<32x128xf32, #tpu.memory_space<vmem>>, vector<1x128xf32>
    %1017 = arith.maximumf %1012, %1016 : vector<1x128xf32>
    %1018 = arith.index_cast %983 : i32 to index
    %c7_412 = arith.constant 7 : index
    %1019 = memref.load %arg1[%1018, %c7_412] : memref<24x8xi32, #tpu.memory_space<smem>>
    %1020 = arith.index_cast %1019 : i32 to index
    %c0_413 = arith.constant 0 : index
    %1021 = vector.load %arg2[%1020, %c0_413] : memref<32x128xf32, #tpu.memory_space<vmem>>, vector<1x128xf32>
    %1022 = arith.maximumf %1017, %1021 : vector<1x128xf32>
    %1023 = arith.index_cast %c7_i32 : i32 to index
    %c0_414 = arith.constant 0 : index
    %1024 = vector.load %arg6[%1023, %c0_414] : memref<8x128xf32, #tpu.memory_space<vmem>>, vector<1x128xf32>
    tpu.vector_store %arg6[%1023, %c0_414], %1022 {strides = array<i32>} : memref<8x128xf32, #tpu.memory_space<vmem>>, vector<1x128xf32>,
    %c8_i32_415 = arith.constant 8 : i32
    %c0_416 = arith.constant 0 : index
    %c0_417 = arith.constant 0 : index
    %1025 = vector.load %arg4[%c0_416, %c0_417] : memref<8x128xf32, #tpu.memory_space<vmem>>, vector<8x128xf32>
    %1026 = arith.mulf %1025, %1025 : vector<8x128xf32>
    %cst = arith.constant dense<0.000000e+00> : vector<8xf32>
    %1027 = vector.multi_reduction <add>, %1026, %cst [1] : vector<8x128xf32> to vector<8xf32>
    %1028 = vector.shape_cast %1027 : vector<8xf32> to vector<8x1xf32>
    %cst_418 = arith.constant 1.000000e-24 : f32
    %1029 = vector.broadcast %cst_418 : f32 to vector<8x1xf32>
    %1030 = arith.maximumf %1028, %1029 : vector<8x1xf32>
    %1031 = math.rsqrt %1030 : vector<8x1xf32>
    %1032 = vector.broadcast %1031 : vector<8x1xf32> to vector<8x128xf32>
    %1033 = arith.mulf %1025, %1032 : vector<8x128xf32>
    %c0_419 = arith.constant 0 : index
    %c0_420 = arith.constant 0 : index
    %1034 = vector.load %arg5[%c0_419, %c0_420] : memref<8x128xf32, #tpu.memory_space<vmem>>, vector<8x128xf32>
    %1035 = arith.mulf %1034, %1034 : vector<8x128xf32>
    %cst_421 = arith.constant dense<0.000000e+00> : vector<8xf32>
    %1036 = vector.multi_reduction <add>, %1035, %cst_421 [1] : vector<8x128xf32> to vector<8xf32>
    %1037 = vector.shape_cast %1036 : vector<8xf32> to vector<8x1xf32>
    %cst_422 = arith.constant 1.000000e-24 : f32
    %1038 = vector.broadcast %cst_422 : f32 to vector<8x1xf32>
    %1039 = arith.maximumf %1037, %1038 : vector<8x1xf32>
    %1040 = math.rsqrt %1039 : vector<8x1xf32>
    %1041 = vector.broadcast %1040 : vector<8x1xf32> to vector<8x128xf32>
    %1042 = arith.mulf %1034, %1041 : vector<8x128xf32>
    %c0_423 = arith.constant 0 : index
    %c0_424 = arith.constant 0 : index
    %1043 = vector.load %arg6[%c0_423, %c0_424] : memref<8x128xf32, #tpu.memory_space<vmem>>, vector<8x128xf32>
    %1044 = arith.mulf %1043, %1043 : vector<8x128xf32>
    %cst_425 = arith.constant dense<0.000000e+00> : vector<8xf32>
    %1045 = vector.multi_reduction <add>, %1044, %cst_425 [1] : vector<8x128xf32> to vector<8xf32>
    %1046 = vector.shape_cast %1045 : vector<8xf32> to vector<8x1xf32>
    %cst_426 = arith.constant 1.000000e-24 : f32
    %1047 = vector.broadcast %cst_426 : f32 to vector<8x1xf32>
    %1048 = arith.maximumf %1046, %1047 : vector<8x1xf32>
    %1049 = math.rsqrt %1048 : vector<8x1xf32>
    %1050 = vector.broadcast %1049 : vector<8x1xf32> to vector<8x128xf32>
    %1051 = arith.mulf %1043, %1050 : vector<8x128xf32>
    %1052 = arith.mulf %1033, %1042 : vector<8x128xf32>
    %cst_427 = arith.constant dense<0.000000e+00> : vector<8xf32>
    %1053 = vector.multi_reduction <add>, %1052, %cst_427 [1] : vector<8x128xf32> to vector<8xf32>
    %1054 = vector.shape_cast %1053 : vector<8xf32> to vector<8x1xf32>
    %cst_428 = arith.constant 1.000000e+00 : f32
    %1055 = vector.broadcast %cst_428 : f32 to vector<8x1xf32>
    %1056 = arith.subf %1055, %1054 : vector<8x1xf32>
    %1057 = arith.mulf %1033, %1051 : vector<8x128xf32>
    %cst_429 = arith.constant dense<0.000000e+00> : vector<8xf32>
    %1058 = vector.multi_reduction <add>, %1057, %cst_429 [1] : vector<8x128xf32> to vector<8xf32>
    %1059 = vector.shape_cast %1058 : vector<8xf32> to vector<8x1xf32>
    %cst_430 = arith.constant 1.000000e+00 : f32
    %1060 = vector.broadcast %cst_430 : f32 to vector<8x1xf32>
    %1061 = arith.subf %1060, %1059 : vector<8x1xf32>
    %1062 = arith.subf %1056, %1061 : vector<8x1xf32>
    %cst_431 = arith.constant 1.000000e-01 : f32
    %1063 = vector.broadcast %cst_431 : f32 to vector<8x1xf32>
    %1064 = arith.addf %1062, %1063 : vector<8x1xf32>
    %cst_432 = arith.constant 0.000000e+00 : f32
    %1065 = vector.broadcast %cst_432 : f32 to vector<8x1xf32>
    %1066 = arith.maximumf %1064, %1065 : vector<8x1xf32>
    %c0_433 = arith.constant 0 : index
    %c0_434 = arith.constant 0 : index
    %1067 = vector.load %arg3[%c0_433, %c0_434] : memref<8x1xf32, #tpu.memory_space<vmem>>, vector<8x1xf32>
    tpu.vector_store %arg3[%c0_433, %c0_434], %1066 {strides = array<i32>} : memref<8x1xf32, #tpu.memory_space<vmem>>, vector<8x1xf32>,
    return
  }
  func.func @transform_0(%arg0: i32, %arg1: memref<24x8xi32, #tpu.memory_space<smem>>) -> (i32, i32) {
    %c0_i32 = arith.constant 0 : i32
    %c0_i32_0 = arith.constant 0 : i32
    %c0_i32_1 = arith.constant 0 : i32
    return %c0_i32, %c0_i32_0 : i32, i32
  }
  func.func @transform_1(%arg0: i32, %arg1: memref<24x8xi32, #tpu.memory_space<smem>>) -> (i32, i32) {
    %c0_i32 = arith.constant 0 : i32
    %c0_i32_0 = arith.constant 0 : i32
    return %arg0, %c0_i32 : i32, i32
  }
}

</mosaic_0001>

<llo_original>
// kernel: tpu_custom_call.1
$region0: #{tpu_custom_call.1}
  #allocation0 [shape = 'u32[]', space=smem, size = 0x4, offset = 0x4, fixed_abs, tag = 'smem constant byte address 0x4 - core index']
  #allocation1 [shape = 'u32[72,128]{1,0:T(1,128)}', space=vmem, size = 0x9000, scoped, tag = 'internal scratch']
  #allocation2 [shape = 'f32[8,128]{1,0:T(8,128)}', space=vmem, size = 0x1000, scoped, tag = 'scratch operand']
  #allocation3 [shape = 'f32[8,128]{1,0:T(8,128)}', space=vmem, size = 0x1000, scoped, tag = 'scratch operand']
  #allocation4 [shape = 'f32[8,128]{1,0:T(8,128)}', space=vmem, size = 0x1000, scoped, tag = 'scratch operand']
  #allocation5 [shape = 's32[1]{0}', space=sflag, size = 0x4, scoped, tag = 'scoped memory for tpu_custom_call.1']
  #allocation6 [shape = 'u8[12288]{0}', space=smem, size = 0x3000, scoped, tag = 'prefetched SMEM operand 0']
  %s0 = inlined_call_operand.vmem [shape: s32[24,8], index: 0, kind: input, shape index: {}]
  %s1 = inlined_call_operand.vmem [shape: f32[32,128], index: 1, kind: input, shape index: {}]
  %s2 = inlined_call_operand.vmem [shape: f32[8,1], index: 2, kind: output, shape index: {}]
  %s3 = sld [smem:[#allocation0]]
  $region14: #{tpu_custom_call.1} parent=0
    _
  %s5 = ssub.s32 1, %s3
  %s6 = scalar_select 0, %s5, %s3
  %s8 = sshll.u32 %s0, 4
  %s9 = int_to_ptr.vmem [resolvable:$true] %s8
  %11 = dma.vmem_to_smem %s9, 384, [#allocation6], [#allocation5]
  %13 = dma.done [#allocation5], 384
  %14 = sfence
  // Predicated region
  $region2: #{tpu_custom_call.1} parent=0 // pred_check
    _
  $region3: #{tpu_custom_call.1} parent=0 // pred_check_branch
    %16 = sbr.rel (0) target = $region5
  $region4: #{tpu_custom_call.1} parent=0 // pred_region
    _
  $region5: #{tpu_custom_call.1} parent=0 // pred_fallthru
    _
  %s17 = smul.u32 0, 8
  %s18 = smul.u32 %s17, 128
  %s19 = sld [smem:[#allocation6 + %s18]]
  %s20 = scalar_lea.vmem %s1, %s19
  %v21 = vld [vmem:[%s20] sm:$0x1]
  %s22 = sadd.s32 %s18, 1
  %s23 = sld [smem:[#allocation6 + %s22]]
  %s24 = scalar_lea.vmem %s1, %s23
  %v25 = vld [vmem:[%s24] sm:$0x1]
  %v26 = vmax.f32 %v21, %v25
  %s27 = sadd.s32 %s18, 2
  %s28 = sld [smem:[#allocation6 + %s27]]
  %s29 = scalar_lea.vmem %s1, %s28
  %v30 = vld [vmem:[%s29] sm:$0x1]
  %v31 = vmax.f32 %v26, %v30
  %s32 = sadd.s32 %s18, 3
  %s33 = sld [smem:[#allocation6 + %s32]]
  %s34 = scalar_lea.vmem %s1, %s33
  %v35 = vld [vmem:[%s34] sm:$0x1]
  %v36 = vmax.f32 %v31, %v35
  %s37 = sadd.s32 %s18, 4
  %s38 = sld [smem:[#allocation6 + %s37]]
  %s39 = scalar_lea.vmem %s1, %s38
  %v40 = vld [vmem:[%s39] sm:$0x1]
  %v41 = vmax.f32 %v36, %v40
  %s42 = sadd.s32 %s18, 5
  %s43 = sld [smem:[#allocation6 + %s42]]
  %s44 = scalar_lea.vmem %s1, %s43
  %v45 = vld [vmem:[%s44] sm:$0x1]
  %v46 = vmax.f32 %v41, %v45
  %s47 = sadd.s32 %s18, 6
  %s48 = sld [smem:[#allocation6 + %s47]]
  %s49 = scalar_lea.vmem %s1, %s48
  %v50 = vld [vmem:[%s49] sm:$0x1]
  %v51 = vmax.f32 %v46, %v50
  %s52 = sadd.s32 %s18, 7
  %s53 = sld [smem:[#allocation6 + %s52]]
  %s54 = scalar_lea.vmem %s1, %s53
  %v55 = vld [vmem:[%s54] sm:$0x1]
  %v56 = vmax.f32 %v51, %v55
  %57 = vst [vmem:[#allocation2] sm:$0x1] %v56
  %s58 = sadd.s32 %s17, 8
  %s59 = smul.u32 %s58, 128
  %s60 = sld [smem:[#allocation6 + %s59]]
  %s61 = scalar_lea.vmem %s1, %s60
  %v62 = vld [vmem:[%s61] sm:$0x1]
  %s63 = sadd.s32 %s59, 1
  %s64 = sld [smem:[#allocation6 + %s63]]
  %s65 = scalar_lea.vmem %s1, %s64
  %v66 = vld [vmem:[%s65] sm:$0x1]
  %v67 = vmax.f32 %v62, %v66
  %s68 = sadd.s32 %s59, 2
  %s69 = sld [smem:[#allocation6 + %s68]]
  %s70 = scalar_lea.vmem %s1, %s69
  %v71 = vld [vmem:[%s70] sm:$0x1]
  %v72 = vmax.f32 %v67, %v71
  %s73 = sadd.s32 %s59, 3
  %s74 = sld [smem:[#allocation6 + %s73]]
  %s75 = scalar_lea.vmem %s1, %s74
  %v76 = vld [vmem:[%s75] sm:$0x1]
  %v77 = vmax.f32 %v72, %v76
  %s78 = sadd.s32 %s59, 4
  %s79 = sld [smem:[#allocation6 + %s78]]
  %s80 = scalar_lea.vmem %s1, %s79
  %v81 = vld [vmem:[%s80] sm:$0x1]
  %v82 = vmax.f32 %v77, %v81
  %s83 = sadd.s32 %s59, 5
  %s84 = sld [smem:[#allocation6 + %s83]]
  %s85 = scalar_lea.vmem %s1, %s84
  %v86 = vld [vmem:[%s85] sm:$0x1]
  %v87 = vmax.f32 %v82, %v86
  %s88 = sadd.s32 %s59, 6
  %s89 = sld [smem:[#allocation6 + %s88]]
  %s90 = scalar_lea.vmem %s1, %s89
  %v91 = vld [vmem:[%s90] sm:$0x1]
  %v92 = vmax.f32 %v87, %v91
  %s93 = sadd.s32 %s59, 7
  %s94 = sld [smem:[#allocation6 + %s93]]
  %s95 = scalar_lea.vmem %s1, %s94
  %v96 = vld [vmem:[%s95] sm:$0x1]
  %v97 = vmax.f32 %v92, %v96
  %98 = vst [vmem:[#allocation3] sm:$0x1] %v97
  %s99 = sadd.s32 %s17, 16
  %s100 = smul.u32 %s99, 128
  %s101 = sld [smem:[#allocation6 + %s100]]
  %s102 = scalar_lea.vmem %s1, %s101
  %v103 = vld [vmem:[%s102] sm:$0x1]
  %s104 = sadd.s32 %s100, 1
  %s105 = sld [smem:[#allocation6 + %s104]]
  %s106 = scalar_lea.vmem %s1, %s105
  %v107 = vld [vmem:[%s106] sm:$0x1]
  %v108 = vmax.f32 %v103, %v107
  %s109 = sadd.s32 %s100, 2
  %s110 = sld [smem:[#allocation6 + %s109]]
  %s111 = scalar_lea.vmem %s1, %s110
  %v112 = vld [vmem:[%s111] sm:$0x1]
  %v113 = vmax.f32 %v108, %v112
  %s114 = sadd.s32 %s100, 3
  %s115 = sld [smem:[#allocation6 + %s114]]
  %s116 = scalar_lea.vmem %s1, %s115
  %v117 = vld [vmem:[%s116] sm:$0x1]
  %v118 = vmax.f32 %v113, %v117
  %s119 = sadd.s32 %s100, 4
  %s120 = sld [smem:[#allocation6 + %s119]]
  %s121 = scalar_lea.vmem %s1, %s120
  %v122 = vld [vmem:[%s121] sm:$0x1]
  %v123 = vmax.f32 %v118, %v122
  %s124 = sadd.s32 %s100, 5
  %s125 = sld [smem:[#allocation6 + %s124]]
  %s126 = scalar_lea.vmem %s1, %s125
  %v127 = vld [vmem:[%s126] sm:$0x1]
  %v128 = vmax.f32 %v123, %v127
  %s129 = sadd.s32 %s100, 6
  %s130 = sld [smem:[#allocation6 + %s129]]
  %s131 = scalar_lea.vmem %s1, %s130
  %v132 = vld [vmem:[%s131] sm:$0x1]
  %v133 = vmax.f32 %v128, %v132
  %s134 = sadd.s32 %s100, 7
  %s135 = sld [smem:[#allocation6 + %s134]]
  %s136 = scalar_lea.vmem %s1, %s135
  %v137 = vld [vmem:[%s136] sm:$0x1]
  %v138 = vmax.f32 %v133, %v137
  %139 = vst [vmem:[#allocation4] sm:$0x1] %v138
  %s140 = sadd.s32 %s17, 1
  %s141 = smul.u32 %s140, 128
  %s142 = sld [smem:[#allocation6 + %s141]]
  %s143 = scalar_lea.vmem %s1, %s142
  %v144 = vld [vmem:[%s143] sm:$0x1]
  %s145 = sadd.s32 %s141, 1
  %s146 = sld [smem:[#allocation6 + %s145]]
  %s147 = scalar_lea.vmem %s1, %s146
  %v148 = vld [vmem:[%s147] sm:$0x1]
  %v149 = vmax.f32 %v144, %v148
  %s150 = sadd.s32 %s141, 2
  %s151 = sld [smem:[#allocation6 + %s150]]
  %s152 = scalar_lea.vmem %s1, %s151
  %v153 = vld [vmem:[%s152] sm:$0x1]
  %v154 = vmax.f32 %v149, %v153
  %s155 = sadd.s32 %s141, 3
  %s156 = sld [smem:[#allocation6 + %s155]]
  %s157 = scalar_lea.vmem %s1, %s156
  %v158 = vld [vmem:[%s157] sm:$0x1]
  %v159 = vmax.f32 %v154, %v158
  %s160 = sadd.s32 %s141, 4
  %s161 = sld [smem:[#allocation6 + %s160]]
  %s162 = scalar_lea.vmem %s1, %s161
  %v163 = vld [vmem:[%s162] sm:$0x1]
  %v164 = vmax.f32 %v159, %v163
  %s165 = sadd.s32 %s141, 5
  %s166 = sld [smem:[#allocation6 + %s165]]
  %s167 = scalar_lea.vmem %s1, %s166
  %v168 = vld [vmem:[%s167] sm:$0x1]
  %v169 = vmax.f32 %v164, %v168
  %s170 = sadd.s32 %s141, 6
  %s171 = sld [smem:[#allocation6 + %s170]]
  %s172 = scalar_lea.vmem %s1, %s171
  %v173 = vld [vmem:[%s172] sm:$0x1]
  %v174 = vmax.f32 %v169, %v173
  %s175 = sadd.s32 %s141, 7
  %s176 = sld [smem:[#allocation6 + %s175]]
  %s177 = scalar_lea.vmem %s1, %s176
  %v178 = vld [vmem:[%s177] sm:$0x1]
  %v179 = vmax.f32 %v174, %v178
  %180 = vst [vmem:[#allocation2 + $0x1] sm:$0x1] %v179
  %s181 = sadd.s32 %s17, 9
  %s182 = smul.u32 %s181, 128
  %s183 = sld [smem:[#allocation6 + %s182]]
  %s184 = scalar_lea.vmem %s1, %s183
  %v185 = vld [vmem:[%s184] sm:$0x1]
  %s186 = sadd.s32 %s182, 1
  %s187 = sld [smem:[#allocation6 + %s186]]
  %s188 = scalar_lea.vmem %s1, %s187
  %v189 = vld [vmem:[%s188] sm:$0x1]
  %v190 = vmax.f32 %v185, %v189
  %s191 = sadd.s32 %s182, 2
  %s192 = sld [smem:[#allocation6 + %s191]]
  %s193 = scalar_lea.vmem %s1, %s192
  %v194 = vld [vmem:[%s193] sm:$0x1]
  %v195 = vmax.f32 %v190, %v194
  %s196 = sadd.s32 %s182, 3
  %s197 = sld [smem:[#allocation6 + %s196]]
  %s198 = scalar_lea.vmem %s1, %s197
  %v199 = vld [vmem:[%s198] sm:$0x1]
  %v200 = vmax.f32 %v195, %v199
  %s201 = sadd.s32 %s182, 4
  %s202 = sld [smem:[#allocation6 + %s201]]
  %s203 = scalar_lea.vmem %s1, %s202
  %v204 = vld [vmem:[%s203] sm:$0x1]
  %v205 = vmax.f32 %v200, %v204
  %s206 = sadd.s32 %s182, 5
  %s207 = sld [smem:[#allocation6 + %s206]]
  %s208 = scalar_lea.vmem %s1, %s207
  %v209 = vld [vmem:[%s208] sm:$0x1]
  %v210 = vmax.f32 %v205, %v209
  %s211 = sadd.s32 %s182, 6
  %s212 = sld [smem:[#allocation6 + %s211]]
  %s213 = scalar_lea.vmem %s1, %s212
  %v214 = vld [vmem:[%s213] sm:$0x1]
  %v215 = vmax.f32 %v210, %v214
  %s216 = sadd.s32 %s182, 7
  %s217 = sld [smem:[#allocation6 + %s216]]
  %s218 = scalar_lea.vmem %s1, %s217
  %v219 = vld [vmem:[%s218] sm:$0x1]
  %v220 = vmax.f32 %v215, %v219
  %221 = vst [vmem:[#allocation3 + $0x1] sm:$0x1] %v220
  %s222 = sadd.s32 %s17, 17
  %s223 = smul.u32 %s222, 128
  %s224 = sld [smem:[#allocation6 + %s223]]
  %s225 = scalar_lea.vmem %s1, %s224
  %v226 = vld [vmem:[%s225] sm:$0x1]
  %s227 = sadd.s32 %s223, 1
  %s228 = sld [smem:[#allocation6 + %s227]]
  %s229 = scalar_lea.vmem %s1, %s228
  %v230 = vld [vmem:[%s229] sm:$0x1]
  %v231 = vmax.f32 %v226, %v230
  %s232 = sadd.s32 %s223, 2
  %s233 = sld [smem:[#allocation6 + %s232]]
  %s234 = scalar_lea.vmem %s1, %s233
  %v235 = vld [vmem:[%s234] sm:$0x1]
  %v236 = vmax.f32 %v231, %v235
  %s237 = sadd.s32 %s223, 3
  %s238 = sld [smem:[#allocation6 + %s237]]
  %s239 = scalar_lea.vmem %s1, %s238
  %v240 = vld [vmem:[%s239] sm:$0x1]
  %v241 = vmax.f32 %v236, %v240
  %s242 = sadd.s32 %s223, 4
  %s243 = sld [smem:[#allocation6 + %s242]]
  %s244 = scalar_lea.vmem %s1, %s243
  %v245 = vld [vmem:[%s244] sm:$0x1]
  %v246 = vmax.f32 %v241, %v245
  %s247 = sadd.s32 %s223, 5
  %s248 = sld [smem:[#allocation6 + %s247]]
  %s249 = scalar_lea.vmem %s1, %s248
  %v250 = vld [vmem:[%s249] sm:$0x1]
  %v251 = vmax.f32 %v246, %v250
  %s252 = sadd.s32 %s223, 6
  %s253 = sld [smem:[#allocation6 + %s252]]
  %s254 = scalar_lea.vmem %s1, %s253
  %v255 = vld [vmem:[%s254] sm:$0x1]
  %v256 = vmax.f32 %v251, %v255
  %s257 = sadd.s32 %s223, 7
  %s258 = sld [smem:[#allocation6 + %s257]]
  %s259 = scalar_lea.vmem %s1, %s258
  %v260 = vld [vmem:[%s259] sm:$0x1]
  %v261 = vmax.f32 %v256, %v260
  %262 = vst [vmem:[#allocation4 + $0x1] sm:$0x1] %v261
  %s263 = sadd.s32 %s17, 2
  %s264 = smul.u32 %s263, 128
  %s265 = sld [smem:[#allocation6 + %s264]]
  %s266 = scalar_lea.vmem %s1, %s265
  %v267 = vld [vmem:[%s266] sm:$0x1]
  %s268 = sadd.s32 %s264, 1
  %s269 = sld [smem:[#allocation6 + %s268]]
  %s270 = scalar_lea.vmem %s1, %s269
  %v271 = vld [vmem:[%s270] sm:$0x1]
  %v272 = vmax.f32 %v267, %v271
  %s273 = sadd.s32 %s264, 2
  %s274 = sld [smem:[#allocation6 + %s273]]
  %s275 = scalar_lea.vmem %s1, %s274
  %v276 = vld [vmem:[%s275] sm:$0x1]
  %v277 = vmax.f32 %v272, %v276
  %s278 = sadd.s32 %s264, 3
  %s279 = sld [smem:[#allocation6 + %s278]]
  %s280 = scalar_lea.vmem %s1, %s279
  %v281 = vld [vmem:[%s280] sm:$0x1]
  %v282 = vmax.f32 %v277, %v281
  %s283 = sadd.s32 %s264, 4
  %s284 = sld [smem:[#allocation6 + %s283]]
  %s285 = scalar_lea.vmem %s1, %s284
  %v286 = vld [vmem:[%s285] sm:$0x1]
  %v287 = vmax.f32 %v282, %v286
  %s288 = sadd.s32 %s264, 5
  %s289 = sld [smem:[#allocation6 + %s288]]
  %s290 = scalar_lea.vmem %s1, %s289
  %v291 = vld [vmem:[%s290] sm:$0x1]
  %v292 = vmax.f32 %v287, %v291
  %s293 = sadd.s32 %s264, 6
  %s294 = sld [smem:[#allocation6 + %s293]]
  %s295 = scalar_lea.vmem %s1, %s294
  %v296 = vld [vmem:[%s295] sm:$0x1]
  %v297 = vmax.f32 %v292, %v296
  %s298 = sadd.s32 %s264, 7
  %s299 = sld [smem:[#allocation6 + %s298]]
  %s300 = scalar_lea.vmem %s1, %s299
  %v301 = vld [vmem:[%s300] sm:$0x1]
  %v302 = vmax.f32 %v297, %v301
  %303 = vst [vmem:[#allocation2 + $0x2] sm:$0x1] %v302
  %s304 = sadd.s32 %s17, 10
  %s305 = smul.u32 %s304, 128
  %s306 = sld [smem:[#allocation6 + %s305]]
  %s307 = scalar_lea.vmem %s1, %s306
  %v308 = vld [vmem:[%s307] sm:$0x1]
  %s309 = sadd.s32 %s305, 1
  %s310 = sld [smem:[#allocation6 + %s309]]
  %s311 = scalar_lea.vmem %s1, %s310
  %v312 = vld [vmem:[%s311] sm:$0x1]
  %v313 = vmax.f32 %v308, %v312
  %s314 = sadd.s32 %s305, 2
  %s315 = sld [smem:[#allocation6 + %s314]]
  %s316 = scalar_lea.vmem %s1, %s315
  %v317 = vld [vmem:[%s316] sm:$0x1]
  %v318 = vmax.f32 %v313, %v317
  %s319 = sadd.s32 %s305, 3
  %s320 = sld [smem:[#allocation6 + %s319]]
  %s321 = scalar_lea.vmem %s1, %s320
  %v322 = vld [vmem:[%s321] sm:$0x1]
  %v323 = vmax.f32 %v318, %v322
  %s324 = sadd.s32 %s305, 4
  %s325 = sld [smem:[#allocation6 + %s324]]
  %s326 = scalar_lea.vmem %s1, %s325
  %v327 = vld [vmem:[%s326] sm:$0x1]
  %v328 = vmax.f32 %v323, %v327
  %s329 = sadd.s32 %s305, 5
  %s330 = sld [smem:[#allocation6 + %s329]]
  %s331 = scalar_lea.vmem %s1, %s330
  %v332 = vld [vmem:[%s331] sm:$0x1]
  %v333 = vmax.f32 %v328, %v332
  %s334 = sadd.s32 %s305, 6
  %s335 = sld [smem:[#allocation6 + %s334]]
  %s336 = scalar_lea.vmem %s1, %s335
  %v337 = vld [vmem:[%s336] sm:$0x1]
  %v338 = vmax.f32 %v333, %v337
  %s339 = sadd.s32 %s305, 7
  %s340 = sld [smem:[#allocation6 + %s339]]
  %s341 = scalar_lea.vmem %s1, %s340
  %v342 = vld [vmem:[%s341] sm:$0x1]
  %v343 = vmax.f32 %v338, %v342
  %344 = vst [vmem:[#allocation3 + $0x2] sm:$0x1] %v343
  %s345 = sadd.s32 %s17, 18
  %s346 = smul.u32 %s345, 128
  %s347 = sld [smem:[#allocation6 + %s346]]
  %s348 = scalar_lea.vmem %s1, %s347
  %v349 = vld [vmem:[%s348] sm:$0x1]
  %s350 = sadd.s32 %s346, 1
  %s351 = sld [smem:[#allocation6 + %s350]]
  %s352 = scalar_lea.vmem %s1, %s351
  %v353 = vld [vmem:[%s352] sm:$0x1]
  %v354 = vmax.f32 %v349, %v353
  %s355 = sadd.s32 %s346, 2
  %s356 = sld [smem:[#allocation6 + %s355]]
  %s357 = scalar_lea.vmem %s1, %s356
  %v358 = vld [vmem:[%s357] sm:$0x1]
  %v359 = vmax.f32 %v354, %v358
  %s360 = sadd.s32 %s346, 3
  %s361 = sld [smem:[#allocation6 + %s360]]
  %s362 = scalar_lea.vmem %s1, %s361
  %v363 = vld [vmem:[%s362] sm:$0x1]
  %v364 = vmax.f32 %v359, %v363
  %s365 = sadd.s32 %s346, 4
  %s366 = sld [smem:[#allocation6 + %s365]]
  %s367 = scalar_lea.vmem %s1, %s366
  %v368 = vld [vmem:[%s367] sm:$0x1]
  %v369 = vmax.f32 %v364, %v368
  %s370 = sadd.s32 %s346, 5
  %s371 = sld [smem:[#allocation6 + %s370]]
  %s372 = scalar_lea.vmem %s1, %s371
  %v373 = vld [vmem:[%s372] sm:$0x1]
  %v374 = vmax.f32 %v369, %v373
  %s375 = sadd.s32 %s346, 6
  %s376 = sld [smem:[#allocation6 + %s375]]
  %s377 = scalar_lea.vmem %s1, %s376
  %v378 = vld [vmem:[%s377] sm:$0x1]
  %v379 = vmax.f32 %v374, %v378
  %s380 = sadd.s32 %s346, 7
  %s381 = sld [smem:[#allocation6 + %s380]]
  %s382 = scalar_lea.vmem %s1, %s381
  %v383 = vld [vmem:[%s382] sm:$0x1]
  %v384 = vmax.f32 %v379, %v383
  %385 = vst [vmem:[#allocation4 + $0x2] sm:$0x1] %v384
  %s386 = sadd.s32 %s17, 3
  %s387 = smul.u32 %s386, 128
  %s388 = sld [smem:[#allocation6 + %s387]]
  %s389 = scalar_lea.vmem %s1, %s388
  %v390 = vld [vmem:[%s389] sm:$0x1]
  %s391 = sadd.s32 %s387, 1
  %s392 = sld [smem:[#allocation6 + %s391]]
  %s393 = scalar_lea.vmem %s1, %s392
  %v394 = vld [vmem:[%s393] sm:$0x1]
  %v395 = vmax.f32 %v390, %v394
  %s396 = sadd.s32 %s387, 2
  %s397 = sld [smem:[#allocation6 + %s396]]
  %s398 = scalar_lea.vmem %s1, %s397
  %v399 = vld [vmem:[%s398] sm:$0x1]
  %v400 = vmax.f32 %v395, %v399
  %s401 = sadd.s32 %s387, 3
  %s402 = sld [smem:[#allocation6 + %s401]]
  %s403 = scalar_lea.vmem %s1, %s402
  %v404 = vld [vmem:[%s403] sm:$0x1]
  %v405 = vmax.f32 %v400, %v404
  %s406 = sadd.s32 %s387, 4
  %s407 = sld [smem:[#allocation6 + %s406]]
  %s408 = scalar_lea.vmem %s1, %s407
  %v409 = vld [vmem:[%s408] sm:$0x1]
  %v410 = vmax.f32 %v405, %v409
  %s411 = sadd.s32 %s387, 5
  %s412 = sld [smem:[#allocation6 + %s411]]
  %s413 = scalar_lea.vmem %s1, %s412
  %v414 = vld [vmem:[%s413] sm:$0x1]
  %v415 = vmax.f32 %v410, %v414
  %s416 = sadd.s32 %s387, 6
  %s417 = sld [smem:[#allocation6 + %s416]]
  %s418 = scalar_lea.vmem %s1, %s417
  %v419 = vld [vmem:[%s418] sm:$0x1]
  %v420 = vmax.f32 %v415, %v419
  %s421 = sadd.s32 %s387, 7
  %s422 = sld [smem:[#allocation6 + %s421]]
  %s423 = scalar_lea.vmem %s1, %s422
  %v424 = vld [vmem:[%s423] sm:$0x1]
  %v425 = vmax.f32 %v420, %v424
  %426 = vst [vmem:[#allocation2 + $0x3] sm:$0x1] %v425
  %s427 = sadd.s32 %s17, 11
  %s428 = smul.u32 %s427, 128
  %s429 = sld [smem:[#allocation6 + %s428]]
  %s430 = scalar_lea.vmem %s1, %s429
  %v431 = vld [vmem:[%s430] sm:$0x1]
  %s432 = sadd.s32 %s428, 1
  %s433 = sld [smem:[#allocation6 + %s432]]
  %s434 = scalar_lea.vmem %s1, %s433
  %v435 = vld [vmem:[%s434] sm:$0x1]
  %v436 = vmax.f32 %v431, %v435
  %s437 = sadd.s32 %s428, 2
  %s438 = sld [smem:[#allocation6 + %s437]]
  %s439 = scalar_lea.vmem %s1, %s438
  %v440 = vld [vmem:[%s439] sm:$0x1]
  %v441 = vmax.f32 %v436, %v440
  %s442 = sadd.s32 %s428, 3
  %s443 = sld [smem:[#allocation6 + %s442]]
  %s444 = scalar_lea.vmem %s1, %s443
  %v445 = vld [vmem:[%s444] sm:$0x1]
  %v446 = vmax.f32 %v441, %v445
  %s447 = sadd.s32 %s428, 4
  %s448 = sld [smem:[#allocation6 + %s447]]
  %s449 = scalar_lea.vmem %s1, %s448
  %v450 = vld [vmem:[%s449] sm:$0x1]
  %v451 = vmax.f32 %v446, %v450
  %s452 = sadd.s32 %s428, 5
  %s453 = sld [smem:[#allocation6 + %s452]]
  %s454 = scalar_lea.vmem %s1, %s453
  %v455 = vld [vmem:[%s454] sm:$0x1]
  %v456 = vmax.f32 %v451, %v455
  %s457 = sadd.s32 %s428, 6
  %s458 = sld [smem:[#allocation6 + %s457]]
  %s459 = scalar_lea.vmem %s1, %s458
  %v460 = vld [vmem:[%s459] sm:$0x1]
  %v461 = vmax.f32 %v456, %v460
  %s462 = sadd.s32 %s428, 7
  %s463 = sld [smem:[#allocation6 + %s462]]
  %s464 = scalar_lea.vmem %s1, %s463
  %v465 = vld [vmem:[%s464] sm:$0x1]
  %v466 = vmax.f32 %v461, %v465
  %467 = vst [vmem:[#allocation3 + $0x3] sm:$0x1] %v466
  %s468 = sadd.s32 %s17, 19
  %s469 = smul.u32 %s468, 128
  %s470 = sld [smem:[#allocation6 + %s469]]
  %s471 = scalar_lea.vmem %s1, %s470
  %v472 = vld [vmem:[%s471] sm:$0x1]
  %s473 = sadd.s32 %s469, 1
  %s474 = sld [smem:[#allocation6 + %s473]]
  %s475 = scalar_lea.vmem %s1, %s474
  %v476 = vld [vmem:[%s475] sm:$0x1]
  %v477 = vmax.f32 %v472, %v476
  %s478 = sadd.s32 %s469, 2
  %s479 = sld [smem:[#allocation6 + %s478]]
  %s480 = scalar_lea.vmem %s1, %s479
  %v481 = vld [vmem:[%s480] sm:$0x1]
  %v482 = vmax.f32 %v477, %v481
  %s483 = sadd.s32 %s469, 3
  %s484 = sld [smem:[#allocation6 + %s483]]
  %s485 = scalar_lea.vmem %s1, %s484
  %v486 = vld [vmem:[%s485] sm:$0x1]
  %v487 = vmax.f32 %v482, %v486
  %s488 = sadd.s32 %s469, 4
  %s489 = sld [smem:[#allocation6 + %s488]]
  %s490 = scalar_lea.vmem %s1, %s489
  %v491 = vld [vmem:[%s490] sm:$0x1]
  %v492 = vmax.f32 %v487, %v491
  %s493 = sadd.s32 %s469, 5
  %s494 = sld [smem:[#allocation6 + %s493]]
  %s495 = scalar_lea.vmem %s1, %s494
  %v496 = vld [vmem:[%s495] sm:$0x1]
  %v497 = vmax.f32 %v492, %v496
  %s498 = sadd.s32 %s469, 6
  %s499 = sld [smem:[#allocation6 + %s498]]
  %s500 = scalar_lea.vmem %s1, %s499
  %v501 = vld [vmem:[%s500] sm:$0x1]
  %v502 = vmax.f32 %v497, %v501
  %s503 = sadd.s32 %s469, 7
  %s504 = sld [smem:[#allocation6 + %s503]]
  %s505 = scalar_lea.vmem %s1, %s504
  %v506 = vld [vmem:[%s505] sm:$0x1]
  %v507 = vmax.f32 %v502, %v506
  %508 = vst [vmem:[#allocation4 + $0x3] sm:$0x1] %v507
  %s509 = sadd.s32 %s17, 4
  %s510 = smul.u32 %s509, 128
  %s511 = sld [smem:[#allocation6 + %s510]]
  %s512 = scalar_lea.vmem %s1, %s511
  %v513 = vld [vmem:[%s512] sm:$0x1]
  %s514 = sadd.s32 %s510, 1
  %s515 = sld [smem:[#allocation6 + %s514]]
  %s516 = scalar_lea.vmem %s1, %s515
  %v517 = vld [vmem:[%s516] sm:$0x1]
  %v518 = vmax.f32 %v513, %v517
  %s519 = sadd.s32 %s510, 2
  %s520 = sld [smem:[#allocation6 + %s519]]
  %s521 = scalar_lea.vmem %s1, %s520
  %v522 = vld [vmem:[%s521] sm:$0x1]
  %v523 = vmax.f32 %v518, %v522
  %s524 = sadd.s32 %s510, 3
  %s525 = sld [smem:[#allocation6 + %s524]]
  %s526 = scalar_lea.vmem %s1, %s525
  %v527 = vld [vmem:[%s526] sm:$0x1]
  %v528 = vmax.f32 %v523, %v527
  %s529 = sadd.s32 %s510, 4
  %s530 = sld [smem:[#allocation6 + %s529]]
  %s531 = scalar_lea.vmem %s1, %s530
  %v532 = vld [vmem:[%s531] sm:$0x1]
  %v533 = vmax.f32 %v528, %v532
  %s534 = sadd.s32 %s510, 5
  %s535 = sld [smem:[#allocation6 + %s534]]
  %s536 = scalar_lea.vmem %s1, %s535
  %v537 = vld [vmem:[%s536] sm:$0x1]
  %v538 = vmax.f32 %v533, %v537
  %s539 = sadd.s32 %s510, 6
  %s540 = sld [smem:[#allocation6 + %s539]]
  %s541 = scalar_lea.vmem %s1, %s540
  %v542 = vld [vmem:[%s541] sm:$0x1]
  %v543 = vmax.f32 %v538, %v542
  %s544 = sadd.s32 %s510, 7
  %s545 = sld [smem:[#allocation6 + %s544]]
  %s546 = scalar_lea.vmem %s1, %s545
  %v547 = vld [vmem:[%s546] sm:$0x1]
  %v548 = vmax.f32 %v543, %v547
  %549 = vst [vmem:[#allocation2 + $0x4] sm:$0x1] %v548
  %s550 = sadd.s32 %s17, 12
  %s551 = smul.u32 %s550, 128
  %s552 = sld [smem:[#allocation6 + %s551]]
  %s553 = scalar_lea.vmem %s1, %s552
  %v554 = vld [vmem:[%s553] sm:$0x1]
  %s555 = sadd.s32 %s551, 1
  %s556 = sld [smem:[#allocation6 + %s555]]
  %s557 = scalar_lea.vmem %s1, %s556
  %v558 = vld [vmem:[%s557] sm:$0x1]
  %v559 = vmax.f32 %v554, %v558
  %s560 = sadd.s32 %s551, 2
  %s561 = sld [smem:[#allocation6 + %s560]]
  %s562 = scalar_lea.vmem %s1, %s561
  %v563 = vld [vmem:[%s562] sm:$0x1]
  %v564 = vmax.f32 %v559, %v563
  %s565 = sadd.s32 %s551, 3
  %s566 = sld [smem:[#allocation6 + %s565]]
  %s567 = scalar_lea.vmem %s1, %s566
  %v568 = vld [vmem:[%s567] sm:$0x1]
  %v569 = vmax.f32 %v564, %v568
  %s570 = sadd.s32 %s551, 4
  %s571 = sld [smem:[#allocation6 + %s570]]
  %s572 = scalar_lea.vmem %s1, %s571
  %v573 = vld [vmem:[%s572] sm:$0x1]
  %v574 = vmax.f32 %v569, %v573
  %s575 = sadd.s32 %s551, 5
  %s576 = sld [smem:[#allocation6 + %s575]]
  %s577 = scalar_lea.vmem %s1, %s576
  %v578 = vld [vmem:[%s577] sm:$0x1]
  %v579 = vmax.f32 %v574, %v578
  %s580 = sadd.s32 %s551, 6
  %s581 = sld [smem:[#allocation6 + %s580]]
  %s582 = scalar_lea.vmem %s1, %s581
  %v583 = vld [vmem:[%s582] sm:$0x1]
  %v584 = vmax.f32 %v579, %v583
  %s585 = sadd.s32 %s551, 7
  %s586 = sld [smem:[#allocation6 + %s585]]
  %s587 = scalar_lea.vmem %s1, %s586
  %v588 = vld [vmem:[%s587] sm:$0x1]
  %v589 = vmax.f32 %v584, %v588
  %590 = vst [vmem:[#allocation3 + $0x4] sm:$0x1] %v589
  %s591 = sadd.s32 %s17, 20
  %s592 = smul.u32 %s591, 128
  %s593 = sld [smem:[#allocation6 + %s592]]
  %s594 = scalar_lea.vmem %s1, %s593
  %v595 = vld [vmem:[%s594] sm:$0x1]
  %s596 = sadd.s32 %s592, 1
  %s597 = sld [smem:[#allocation6 + %s596]]
  %s598 = scalar_lea.vmem %s1, %s597
  %v599 = vld [vmem:[%s598] sm:$0x1]
  %v600 = vmax.f32 %v595, %v599
  %s601 = sadd.s32 %s592, 2
  %s602 = sld [smem:[#allocation6 + %s601]]
  %s603 = scalar_lea.vmem %s1, %s602
  %v604 = vld [vmem:[%s603] sm:$0x1]
  %v605 = vmax.f32 %v600, %v604
  %s606 = sadd.s32 %s592, 3
  %s607 = sld [smem:[#allocation6 + %s606]]
  %s608 = scalar_lea.vmem %s1, %s607
  %v609 = vld [vmem:[%s608] sm:$0x1]
  %v610 = vmax.f32 %v605, %v609
  %s611 = sadd.s32 %s592, 4
  %s612 = sld [smem:[#allocation6 + %s611]]
  %s613 = scalar_lea.vmem %s1, %s612
  %v614 = vld [vmem:[%s613] sm:$0x1]
  %v615 = vmax.f32 %v610, %v614
  %s616 = sadd.s32 %s592, 5
  %s617 = sld [smem:[#allocation6 + %s616]]
  %s618 = scalar_lea.vmem %s1, %s617
  %v619 = vld [vmem:[%s618] sm:$0x1]
  %v620 = vmax.f32 %v615, %v619
  %s621 = sadd.s32 %s592, 6
  %s622 = sld [smem:[#allocation6 + %s621]]
  %s623 = scalar_lea.vmem %s1, %s622
  %v624 = vld [vmem:[%s623] sm:$0x1]
  %v625 = vmax.f32 %v620, %v624
  %s626 = sadd.s32 %s592, 7
  %s627 = sld [smem:[#allocation6 + %s626]]
  %s628 = scalar_lea.vmem %s1, %s627
  %v629 = vld [vmem:[%s628] sm:$0x1]
  %v630 = vmax.f32 %v625, %v629
  %631 = vst [vmem:[#allocation4 + $0x4] sm:$0x1] %v630
  %s632 = sadd.s32 %s17, 5
  %s633 = smul.u32 %s632, 128
  %s634 = sld [smem:[#allocation6 + %s633]]
  %s635 = scalar_lea.vmem %s1, %s634
  %v636 = vld [vmem:[%s635] sm:$0x1]
  %s637 = sadd.s32 %s633, 1
  %s638 = sld [smem:[#allocation6 + %s637]]
  %s639 = scalar_lea.vmem %s1, %s638
  %v640 = vld [vmem:[%s639] sm:$0x1]
  %v641 = vmax.f32 %v636, %v640
  %s642 = sadd.s32 %s633, 2
  %s643 = sld [smem:[#allocation6 + %s642]]
  %s644 = scalar_lea.vmem %s1, %s643
  %v645 = vld [vmem:[%s644] sm:$0x1]
  %v646 = vmax.f32 %v641, %v645
  %s647 = sadd.s32 %s633, 3
  %s648 = sld [smem:[#allocation6 + %s647]]
  %s649 = scalar_lea.vmem %s1, %s648
  %v650 = vld [vmem:[%s649] sm:$0x1]
  %v651 = vmax.f32 %v646, %v650
  %s652 = sadd.s32 %s633, 4
  %s653 = sld [smem:[#allocation6 + %s652]]
  %s654 = scalar_lea.vmem %s1, %s653
  %v655 = vld [vmem:[%s654] sm:$0x1]
  %v656 = vmax.f32 %v651, %v655
  %s657 = sadd.s32 %s633, 5
  %s658 = sld [smem:[#allocation6 + %s657]]
  %s659 = scalar_lea.vmem %s1, %s658
  %v660 = vld [vmem:[%s659] sm:$0x1]
  %v661 = vmax.f32 %v656, %v660
  %s662 = sadd.s32 %s633, 6
  %s663 = sld [smem:[#allocation6 + %s662]]
  %s664 = scalar_lea.vmem %s1, %s663
  %v665 = vld [vmem:[%s664] sm:$0x1]
  %v666 = vmax.f32 %v661, %v665
  %s667 = sadd.s32 %s633, 7
  %s668 = sld [smem:[#allocation6 + %s667]]
  %s669 = scalar_lea.vmem %s1, %s668
  %v670 = vld [vmem:[%s669] sm:$0x1]
  %v671 = vmax.f32 %v666, %v670
  %672 = vst [vmem:[#allocation2 + $0x5] sm:$0x1] %v671
  %s673 = sadd.s32 %s17, 13
  %s674 = smul.u32 %s673, 128
  %s675 = sld [smem:[#allocation6 + %s674]]
  %s676 = scalar_lea.vmem %s1, %s675
  %v677 = vld [vmem:[%s676] sm:$0x1]
  %s678 = sadd.s32 %s674, 1
  %s679 = sld [smem:[#allocation6 + %s678]]
  %s680 = scalar_lea.vmem %s1, %s679
  %v681 = vld [vmem:[%s680] sm:$0x1]
  %v682 = vmax.f32 %v677, %v681
  %s683 = sadd.s32 %s674, 2
  %s684 = sld [smem:[#allocation6 + %s683]]
  %s685 = scalar_lea.vmem %s1, %s684
  %v686 = vld [vmem:[%s685] sm:$0x1]
  %v687 = vmax.f32 %v682, %v686
  %s688 = sadd.s32 %s674, 3
  %s689 = sld [smem:[#allocation6 + %s688]]
  %s690 = scalar_lea.vmem %s1, %s689
  %v691 = vld [vmem:[%s690] sm:$0x1]
  %v692 = vmax.f32 %v687, %v691
  %s693 = sadd.s32 %s674, 4
  %s694 = sld [smem:[#allocation6 + %s693]]
  %s695 = scalar_lea.vmem %s1, %s694
  %v696 = vld [vmem:[%s695] sm:$0x1]
  %v697 = vmax.f32 %v692, %v696
  %s698 = sadd.s32 %s674, 5
  %s699 = sld [smem:[#allocation6 + %s698]]
  %s700 = scalar_lea.vmem %s1, %s699
  %v701 = vld [vmem:[%s700] sm:$0x1]
  %v702 = vmax.f32 %v697, %v701
  %s703 = sadd.s32 %s674, 6
  %s704 = sld [smem:[#allocation6 + %s703]]
  %s705 = scalar_lea.vmem %s1, %s704
  %v706 = vld [vmem:[%s705] sm:$0x1]
  %v707 = vmax.f32 %v702, %v706
  %s708 = sadd.s32 %s674, 7
  %s709 = sld [smem:[#allocation6 + %s708]]
  %s710 = scalar_lea.vmem %s1, %s709
  %v711 = vld [vmem:[%s710] sm:$0x1]
  %v712 = vmax.f32 %v707, %v711
  %713 = vst [vmem:[#allocation3 + $0x5] sm:$0x1] %v712
  %s714 = sadd.s32 %s17, 21
  %s715 = smul.u32 %s714, 128
  %s716 = sld [smem:[#allocation6 + %s715]]
  %s717 = scalar_lea.vmem %s1, %s716
  %v718 = vld [vmem:[%s717] sm:$0x1]
  %s719 = sadd.s32 %s715, 1
  %s720 = sld [smem:[#allocation6 + %s719]]
  %s721 = scalar_lea.vmem %s1, %s720
  %v722 = vld [vmem:[%s721] sm:$0x1]
  %v723 = vmax.f32 %v718, %v722
  %s724 = sadd.s32 %s715, 2
  %s725 = sld [smem:[#allocation6 + %s724]]
  %s726 = scalar_lea.vmem %s1, %s725
  %v727 = vld [vmem:[%s726] sm:$0x1]
  %v728 = vmax.f32 %v723, %v727
  %s729 = sadd.s32 %s715, 3
  %s730 = sld [smem:[#allocation6 + %s729]]
  %s731 = scalar_lea.vmem %s1, %s730
  %v732 = vld [vmem:[%s731] sm:$0x1]
  %v733 = vmax.f32 %v728, %v732
  %s734 = sadd.s32 %s715, 4
  %s735 = sld [smem:[#allocation6 + %s734]]
  %s736 = scalar_lea.vmem %s1, %s735
  %v737 = vld [vmem:[%s736] sm:$0x1]
  %v738 = vmax.f32 %v733, %v737
  %s739 = sadd.s32 %s715, 5
  %s740 = sld [smem:[#allocation6 + %s739]]
  %s741 = scalar_lea.vmem %s1, %s740
  %v742 = vld [vmem:[%s741] sm:$0x1]
  %v743 = vmax.f32 %v738, %v742
  %s744 = sadd.s32 %s715, 6
  %s745 = sld [smem:[#allocation6 + %s744]]
  %s746 = scalar_lea.vmem %s1, %s745
  %v747 = vld [vmem:[%s746] sm:$0x1]
  %v748 = vmax.f32 %v743, %v747
  %s749 = sadd.s32 %s715, 7
  %s750 = sld [smem:[#allocation6 + %s749]]
  %s751 = scalar_lea.vmem %s1, %s750
  %v752 = vld [vmem:[%s751] sm:$0x1]
  %v753 = vmax.f32 %v748, %v752
  %754 = vst [vmem:[#allocation4 + $0x5] sm:$0x1] %v753
  %s755 = sadd.s32 %s17, 6
  %s756 = smul.u32 %s755, 128
  %s757 = sld [smem:[#allocation6 + %s756]]
  %s758 = scalar_lea.vmem %s1, %s757
  %v759 = vld [vmem:[%s758] sm:$0x1]
  %s760 = sadd.s32 %s756, 1
  %s761 = sld [smem:[#allocation6 + %s760]]
  %s762 = scalar_lea.vmem %s1, %s761
  %v763 = vld [vmem:[%s762] sm:$0x1]
  %v764 = vmax.f32 %v759, %v763
  %s765 = sadd.s32 %s756, 2
  %s766 = sld [smem:[#allocation6 + %s765]]
  %s767 = scalar_lea.vmem %s1, %s766
  %v768 = vld [vmem:[%s767] sm:$0x1]
  %v769 = vmax.f32 %v764, %v768
  %s770 = sadd.s32 %s756, 3
  %s771 = sld [smem:[#allocation6 + %s770]]
  %s772 = scalar_lea.vmem %s1, %s771
  %v773 = vld [vmem:[%s772] sm:$0x1]
  %v774 = vmax.f32 %v769, %v773
  %s775 = sadd.s32 %s756, 4
  %s776 = sld [smem:[#allocation6 + %s775]]
  %s777 = scalar_lea.vmem %s1, %s776
  %v778 = vld [vmem:[%s777] sm:$0x1]
  %v779 = vmax.f32 %v774, %v778
  %s780 = sadd.s32 %s756, 5
  %s781 = sld [smem:[#allocation6 + %s780]]
  %s782 = scalar_lea.vmem %s1, %s781
  %v783 = vld [vmem:[%s782] sm:$0x1]
  %v784 = vmax.f32 %v779, %v783
  %s785 = sadd.s32 %s756, 6
  %s786 = sld [smem:[#allocation6 + %s785]]
  %s787 = scalar_lea.vmem %s1, %s786
  %v788 = vld [vmem:[%s787] sm:$0x1]
  %v789 = vmax.f32 %v784, %v788
  %s790 = sadd.s32 %s756, 7
  %s791 = sld [smem:[#allocation6 + %s790]]
  %s792 = scalar_lea.vmem %s1, %s791
  %v793 = vld [vmem:[%s792] sm:$0x1]
  %v794 = vmax.f32 %v789, %v793
  %795 = vst [vmem:[#allocation2 + $0x6] sm:$0x1] %v794
  %s796 = sadd.s32 %s17, 14
  %s797 = smul.u32 %s796, 128
  %s798 = sld [smem:[#allocation6 + %s797]]
  %s799 = scalar_lea.vmem %s1, %s798
  %v800 = vld [vmem:[%s799] sm:$0x1]
  %s801 = sadd.s32 %s797, 1
  %s802 = sld [smem:[#allocation6 + %s801]]
  %s803 = scalar_lea.vmem %s1, %s802
  %v804 = vld [vmem:[%s803] sm:$0x1]
  %v805 = vmax.f32 %v800, %v804
  %s806 = sadd.s32 %s797, 2
  %s807 = sld [smem:[#allocation6 + %s806]]
  %s808 = scalar_lea.vmem %s1, %s807
  %v809 = vld [vmem:[%s808] sm:$0x1]
  %v810 = vmax.f32 %v805, %v809
  %s811 = sadd.s32 %s797, 3
  %s812 = sld [smem:[#allocation6 + %s811]]
  %s813 = scalar_lea.vmem %s1, %s812
  %v814 = vld [vmem:[%s813] sm:$0x1]
  %v815 = vmax.f32 %v810, %v814
  %s816 = sadd.s32 %s797, 4
  %s817 = sld [smem:[#allocation6 + %s816]]
  %s818 = scalar_lea.vmem %s1, %s817
  %v819 = vld [vmem:[%s818] sm:$0x1]
  %v820 = vmax.f32 %v815, %v819
  %s821 = sadd.s32 %s797, 5
  %s822 = sld [smem:[#allocation6 + %s821]]
  %s823 = scalar_lea.vmem %s1, %s822
  %v824 = vld [vmem:[%s823] sm:$0x1]
  %v825 = vmax.f32 %v820, %v824
  %s826 = sadd.s32 %s797, 6
  %s827 = sld [smem:[#allocation6 + %s826]]
  %s828 = scalar_lea.vmem %s1, %s827
  %v829 = vld [vmem:[%s828] sm:$0x1]
  %v830 = vmax.f32 %v825, %v829
  %s831 = sadd.s32 %s797, 7
  %s832 = sld [smem:[#allocation6 + %s831]]
  %s833 = scalar_lea.vmem %s1, %s832
  %v834 = vld [vmem:[%s833] sm:$0x1]
  %v835 = vmax.f32 %v830, %v834
  %836 = vst [vmem:[#allocation3 + $0x6] sm:$0x1] %v835
  %s837 = sadd.s32 %s17, 22
  %s838 = smul.u32 %s837, 128
  %s839 = sld [smem:[#allocation6 + %s838]]
  %s840 = scalar_lea.vmem %s1, %s839
  %v841 = vld [vmem:[%s840] sm:$0x1]
  %s842 = sadd.s32 %s838, 1
  %s843 = sld [smem:[#allocation6 + %s842]]
  %s844 = scalar_lea.vmem %s1, %s843
  %v845 = vld [vmem:[%s844] sm:$0x1]
  %v846 = vmax.f32 %v841, %v845
  %s847 = sadd.s32 %s838, 2
  %s848 = sld [smem:[#allocation6 + %s847]]
  %s849 = scalar_lea.vmem %s1, %s848
  %v850 = vld [vmem:[%s849] sm:$0x1]
  %v851 = vmax.f32 %v846, %v850
  %s852 = sadd.s32 %s838, 3
  %s853 = sld [smem:[#allocation6 + %s852]]
  %s854 = scalar_lea.vmem %s1, %s853
  %v855 = vld [vmem:[%s854] sm:$0x1]
  %v856 = vmax.f32 %v851, %v855
  %s857 = sadd.s32 %s838, 4
  %s858 = sld [smem:[#allocation6 + %s857]]
  %s859 = scalar_lea.vmem %s1, %s858
  %v860 = vld [vmem:[%s859] sm:$0x1]
  %v861 = vmax.f32 %v856, %v860
  %s862 = sadd.s32 %s838, 5
  %s863 = sld [smem:[#allocation6 + %s862]]
  %s864 = scalar_lea.vmem %s1, %s863
  %v865 = vld [vmem:[%s864] sm:$0x1]
  %v866 = vmax.f32 %v861, %v865
  %s867 = sadd.s32 %s838, 6
  %s868 = sld [smem:[#allocation6 + %s867]]
  %s869 = scalar_lea.vmem %s1, %s868
  %v870 = vld [vmem:[%s869] sm:$0x1]
  %v871 = vmax.f32 %v866, %v870
  %s872 = sadd.s32 %s838, 7
  %s873 = sld [smem:[#allocation6 + %s872]]
  %s874 = scalar_lea.vmem %s1, %s873
  %v875 = vld [vmem:[%s874] sm:$0x1]
  %v876 = vmax.f32 %v871, %v875
  %877 = vst [vmem:[#allocation4 + $0x6] sm:$0x1] %v876
  %s878 = sadd.s32 %s17, 7
  %s879 = smul.u32 %s878, 128
  %s880 = sld [smem:[#allocation6 + %s879]]
  %s881 = scalar_lea.vmem %s1, %s880
  %v882 = vld [vmem:[%s881] sm:$0x1]
  %s883 = sadd.s32 %s879, 1
  %s884 = sld [smem:[#allocation6 + %s883]]
  %s885 = scalar_lea.vmem %s1, %s884
  %v886 = vld [vmem:[%s885] sm:$0x1]
  %v887 = vmax.f32 %v882, %v886
  %s888 = sadd.s32 %s879, 2
  %s889 = sld [smem:[#allocation6 + %s888]]
  %s890 = scalar_lea.vmem %s1, %s889
  %v891 = vld [vmem:[%s890] sm:$0x1]
  %v892 = vmax.f32 %v887, %v891
  %s893 = sadd.s32 %s879, 3
  %s894 = sld [smem:[#allocation6 + %s893]]
  %s895 = scalar_lea.vmem %s1, %s894
  %v896 = vld [vmem:[%s895] sm:$0x1]
  %v897 = vmax.f32 %v892, %v896
  %s898 = sadd.s32 %s879, 4
  %s899 = sld [smem:[#allocation6 + %s898]]
  %s900 = scalar_lea.vmem %s1, %s899
  %v901 = vld [vmem:[%s900] sm:$0x1]
  %v902 = vmax.f32 %v897, %v901
  %s903 = sadd.s32 %s879, 5
  %s904 = sld [smem:[#allocation6 + %s903]]
  %s905 = scalar_lea.vmem %s1, %s904
  %v906 = vld [vmem:[%s905] sm:$0x1]
  %v907 = vmax.f32 %v902, %v906
  %s908 = sadd.s32 %s879, 6
  %s909 = sld [smem:[#allocation6 + %s908]]
  %s910 = scalar_lea.vmem %s1, %s909
  %v911 = vld [vmem:[%s910] sm:$0x1]
  %v912 = vmax.f32 %v907, %v911
  %s913 = sadd.s32 %s879, 7
  %s914 = sld [smem:[#allocation6 + %s913]]
  %s915 = scalar_lea.vmem %s1, %s914
  %v916 = vld [vmem:[%s915] sm:$0x1]
  %v917 = vmax.f32 %v912, %v916
  %918 = vst [vmem:[#allocation2 + $0x7] sm:$0x1] %v917
  %s919 = sadd.s32 %s17, 15
  %s920 = smul.u32 %s919, 128
  %s921 = sld [smem:[#allocation6 + %s920]]
  %s922 = scalar_lea.vmem %s1, %s921
  %v923 = vld [vmem:[%s922] sm:$0x1]
  %s924 = sadd.s32 %s920, 1
  %s925 = sld [smem:[#allocation6 + %s924]]
  %s926 = scalar_lea.vmem %s1, %s925
  %v927 = vld [vmem:[%s926] sm:$0x1]
  %v928 = vmax.f32 %v923, %v927
  %s929 = sadd.s32 %s920, 2
  %s930 = sld [smem:[#allocation6 + %s929]]
  %s931 = scalar_lea.vmem %s1, %s930
  %v932 = vld [vmem:[%s931] sm:$0x1]
  %v933 = vmax.f32 %v928, %v932
  %s934 = sadd.s32 %s920, 3
  %s935 = sld [smem:[#allocation6 + %s934]]
  %s936 = scalar_lea.vmem %s1, %s935
  %v937 = vld [vmem:[%s936] sm:$0x1]
  %v938 = vmax.f32 %v933, %v937
  %s939 = sadd.s32 %s920, 4
  %s940 = sld [smem:[#allocation6 + %s939]]
  %s941 = scalar_lea.vmem %s1, %s940
  %v942 = vld [vmem:[%s941] sm:$0x1]
  %v943 = vmax.f32 %v938, %v942
  %s944 = sadd.s32 %s920, 5
  %s945 = sld [smem:[#allocation6 + %s944]]
  %s946 = scalar_lea.vmem %s1, %s945
  %v947 = vld [vmem:[%s946] sm:$0x1]
  %v948 = vmax.f32 %v943, %v947
  %s949 = sadd.s32 %s920, 6
  %s950 = sld [smem:[#allocation6 + %s949]]
  %s951 = scalar_lea.vmem %s1, %s950
  %v952 = vld [vmem:[%s951] sm:$0x1]
  %v953 = vmax.f32 %v948, %v952
  %s954 = sadd.s32 %s920, 7
  %s955 = sld [smem:[#allocation6 + %s954]]
  %s956 = scalar_lea.vmem %s1, %s955
  %v957 = vld [vmem:[%s956] sm:$0x1]
  %v958 = vmax.f32 %v953, %v957
  %959 = vst [vmem:[#allocation3 + $0x7] sm:$0x1] %v958
  %s960 = sadd.s32 %s17, 23
  %s961 = smul.u32 %s960, 128
  %s962 = sld [smem:[#allocation6 + %s961]]
  %s963 = scalar_lea.vmem %s1, %s962
  %v964 = vld [vmem:[%s963] sm:$0x1]
  %s965 = sadd.s32 %s961, 1
  %s966 = sld [smem:[#allocation6 + %s965]]
  %s967 = scalar_lea.vmem %s1, %s966
  %v968 = vld [vmem:[%s967] sm:$0x1]
  %v969 = vmax.f32 %v964, %v968
  %s970 = sadd.s32 %s961, 2
  %s971 = sld [smem:[#allocation6 + %s970]]
  %s972 = scalar_lea.vmem %s1, %s971
  %v973 = vld [vmem:[%s972] sm:$0x1]
  %v974 = vmax.f32 %v969, %v973
  %s975 = sadd.s32 %s961, 3
  %s976 = sld [smem:[#allocation6 + %s975]]
  %s977 = scalar_lea.vmem %s1, %s976
  %v978 = vld [vmem:[%s977] sm:$0x1]
  %v979 = vmax.f32 %v974, %v978
  %s980 = sadd.s32 %s961, 4
  %s981 = sld [smem:[#allocation6 + %s980]]
  %s982 = scalar_lea.vmem %s1, %s981
  %v983 = vld [vmem:[%s982] sm:$0x1]
  %v984 = vmax.f32 %v979, %v983
  %s985 = sadd.s32 %s961, 5
  %s986 = sld [smem:[#allocation6 + %s985]]
  %s987 = scalar_lea.vmem %s1, %s986
  %v988 = vld [vmem:[%s987] sm:$0x1]
  %v989 = vmax.f32 %v984, %v988
  %s990 = sadd.s32 %s961, 6
  %s991 = sld [smem:[#allocation6 + %s990]]
  %s992 = scalar_lea.vmem %s1, %s991
  %v993 = vld [vmem:[%s992] sm:$0x1]
  %v994 = vmax.f32 %v989, %v993
  %s995 = sadd.s32 %s961, 7
  %s996 = sld [smem:[#allocation6 + %s995]]
  %s997 = scalar_lea.vmem %s1, %s996
  %v998 = vld [vmem:[%s997] sm:$0x1]
  %v999 = vmax.f32 %v994, %v998
  %1000 = vst [vmem:[#allocation4 + $0x7] sm:$0x1] %v999
  %v1001 = vld [vmem:[#allocation2] sm:$0xff]
  %v1002 = vmul.f32 %v1001, %v1001
  %1003 = vadd.xlane.f32.xlu0 %v1002
  %v1004 = vpop.xlane.xlu0 %1003
  %v1005 = vmax.f32 %v1004, 1e-24
  %v1006 = vrsqrt.pop %v1005
  %v1007 = vmul.f32 %v1006, %v1005
  %v1008 = vmul.f32 %v1007, %v1006
  %v1009 = vmul.f32 0.5, %v1008
  %v1010 = vsub.f32 1.5, %v1009
  %v1011 = vmul.f32 %v1006, %v1010
  %vm1012 = vweird.f32 %v1005
  %vm1013 = vweird.f32 %v1006
  %vm1014 = vmor %vm1012, %vm1013
  %v1015 = vsel %vm1014, %v1006, %v1011
  %v1016 = vmul.f32 %v1001, %v1015
  %v1017 = vld [vmem:[#allocation3] sm:$0xff]
  %v1018 = vmul.f32 %v1017, %v1017
  %1019 = vadd.xlane.f32.xlu0 %v1018
  %v1020 = vpop.xlane.xlu0 %1019
  %v1021 = vmax.f32 %v1020, 1e-24
  %v1022 = vrsqrt.pop %v1021
  %v1023 = vmul.f32 %v1022, %v1021
  %v1024 = vmul.f32 %v1023, %v1022
  %v1025 = vmul.f32 0.5, %v1024
  %v1026 = vsub.f32 1.5, %v1025
  %v1027 = vmul.f32 %v1022, %v1026
  %vm1028 = vweird.f32 %v1021
  %vm1029 = vweird.f32 %v1022
  %vm1030 = vmor %vm1028, %vm1029
  %v1031 = vsel %vm1030, %v1022, %v1027
  %v1032 = vmul.f32 %v1017, %v1031
  %v1033 = vld [vmem:[#allocation4] sm:$0xff]
  %v1034 = vmul.f32 %v1033, %v1033
  %1035 = vadd.xlane.f32.xlu0 %v1034
  %v1036 = vpop.xlane.xlu0 %1035
  %v1037 = vmax.f32 %v1036, 1e-24
  %v1038 = vrsqrt.pop %v1037
  %v1039 = vmul.f32 %v1038, %v1037
  %v1040 = vmul.f32 %v1039, %v1038
  %v1041 = vmul.f32 0.5, %v1040
  %v1042 = vsub.f32 1.5, %v1041
  %v1043 = vmul.f32 %v1038, %v1042
  %vm1044 = vweird.f32 %v1037
  %vm1045 = vweird.f32 %v1038
  %vm1046 = vmor %vm1044, %vm1045
  %v1047 = vsel %vm1046, %v1038, %v1043
  %v1048 = vmul.f32 %v1033, %v1047
  %v1049 = vmul.f32 %v1016, %v1032
  %1050 = vadd.xlane.f32.xlu0 %v1049
  %v1051 = vpop.xlane.xlu0 %1050
  %v1052 = vsub.f32 1.0, %v1051
  %v1053 = vmul.f32 %v1016, %v1048
  %1054 = vadd.xlane.f32.xlu0 %v1053
  %v1055 = vpop.xlane.xlu0 %1054
  %v1056 = vsub.f32 1.0, %v1055
  %v1057 = vsub.f32 %v1052, %v1056
  %v1058 = vadd.f32 %v1057, 0.1
  %v1059 = vmax.f32 %v1058, 0.0
  %vm1060 = vcmask 7168
  %1061 = vst.msk [vmem:[%s2] sm:$0xff] %vm1060, %v1059
  // Predicated region
  $region6: #{tpu_custom_call.1} parent=0 // pred_check
    _
  $region7: #{tpu_custom_call.1} parent=0 // pred_check_branch
    %1063 = sbr.rel (0) target = $region9
  $region8: #{tpu_custom_call.1} parent=0 // pred_region
    _
  $region9: #{tpu_custom_call.1} parent=0 // pred_fallthru
    _
  // Predicated region
  $region10: #{tpu_custom_call.1} parent=0 // pred_check
    _
  $region11: #{tpu_custom_call.1} parent=0 // pred_check_branch
    %1065 = sbr.rel (0) target = $region13
  $region12: #{tpu_custom_call.1} parent=0 // pred_region
    _
  $region13: #{tpu_custom_call.1} parent=0 // pred_fallthru
    _

</llo_original>
